<compile_context>
chip_gen: v6e
topology: v6e:2x2x1
jax: 0.10.0
libtpu: 0.0.40
codegen_flags: <defaults>
</compile_context>

<pallas_src>
import functools

import jax
import jax.numpy as jnp
from jax import lax
from jax.experimental import pallas as pl
from jax.experimental.pallas import tpu as pltpu

EPS = 1e-5


# --------------------------------------------------------------------------
# Fused kernel
# --------------------------------------------------------------------------
def _make_resblock_kernel(H, W, K, Cin, Cout, has_proj):
    HW = H * W
    pad = (K - 1) // 2

    def kernel(x_ref, m_ref, w0_ref, b0_ref, w1_ref, b1_ref, *rest):
        if has_proj:
            wid_ref, bid_ref, o_ref = rest
        else:
            (o_ref,) = rest

        x = x_ref[0].astype(jnp.float32)              # (Cin, HW), lane-dense

        def conv_kxk(inp, w_ref_, b_ref_):
            """inp: (C, HW); w_ref_[t]: (Cout, C); returns (Cout, HW) f32."""
            acc = jnp.zeros((Cout, HW), jnp.float32)
            t = 0
            for kh in range(K):
                dh = kh - pad
                for kw in range(K):
                    dw = kw - pad
                    d = dh * W + dw
                    if d == 0:
                        xs = inp                      # center tap: no shift/mask
                    else:
                        # shifted[p] = inp[p + d]; boundary pixels zeroed by mask
                        xs = pltpu.roll(inp, shift=(-d) % HW, axis=1) * m_ref[t]
                    acc = acc + jnp.dot(w_ref_[t], xs,
                                        preferred_element_type=jnp.float32)
                    t += 1
            return acc + b_ref_[...]                  # (Cout, 1) bias broadcast

        # layer0: conv3x3 -> BN (scale folded into weights) -> ReLU
        h = jnp.maximum(conv_kxk(x, w0_ref, b0_ref), 0.0)

        # identity branch: 1x1 conv -> BN, or plain passthrough
        if has_proj:
            identity = (jnp.dot(wid_ref[...], x,
                                preferred_element_type=jnp.float32)
                        + bid_ref[...])
        else:
            identity = x

        # layer1: conv3x3 -> BN, fused residual add + final ReLU
        out = conv_kxk(h, w1_ref, b1_ref) + identity
        o_ref[0] = jnp.maximum(out, 0.0).astype(o_ref.dtype)

    return kernel


def _make_tap_masks(H, W, K, dtype=jnp.float32):
    """Per-tap boundary masks over the flattened H*W axis, shape (K*K, 1, H*W)."""
    pad = (K - 1) // 2
    r = jnp.arange(H * W, dtype=jnp.int32) // W
    c = jnp.arange(H * W, dtype=jnp.int32) % W
    masks = []
    for kh in range(K):
        dh = kh - pad
        for kw in range(K):
            dw = kw - pad
            ok = ((r + dh >= 0) & (r + dh < H) & (c + dw >= 0) & (c + dw < W))
            masks.append(ok)
    return jnp.stack(masks).astype(dtype).reshape(K * K, 1, H * W)


@functools.partial(jax.jit, static_argnames=("ksize",))
def resblock_forward(x_nchw, folded, *, ksize=3):
    """Fused ResBlock forward.  Input/output are NCHW (PyTorch convention)."""
    B, Cin, H, W = x_nchw.shape
    Cout = folded["w0"].shape[1]
    HW = H * W
    KK = ksize * ksize
    has_proj = "w_id" in folded

    # NCHW bytes are already (B, C, H*W): free reshape, no transpose, no pad.
    x_flat = x_nchw.reshape(B, Cin, HW)
    masks = _make_tap_masks(H, W, ksize)

    in_specs = [
        pl.BlockSpec((1, Cin, HW), lambda b: (b, 0, 0)),       # x        (lane-dense)
        pl.BlockSpec((KK, 1, HW), lambda b: (0, 0, 0)),        # tap masks
        pl.BlockSpec((KK, Cout, Cin), lambda b: (0, 0, 0)),    # w0 (BN scale folded)
        pl.BlockSpec((Cout, 1), lambda b: (0, 0)),             # b0 (BN shift)
        pl.BlockSpec((KK, Cout, Cout), lambda b: (0, 0, 0)),   # w1 (BN scale folded)
        pl.BlockSpec((Cout, 1), lambda b: (0, 0)),             # b1 (BN shift)
    ]
    args = [x_flat, masks, folded["w0"], folded["b0"], folded["w1"], folded["b1"]]
    if has_proj:
        in_specs += [pl.BlockSpec((Cout, Cin), lambda b: (0, 0)),
                     pl.BlockSpec((Cout, 1), lambda b: (0, 0))]
        args += [folded["w_id"], folded["b_id"]]

    kernel = _make_resblock_kernel(H, W, ksize, Cin, Cout, has_proj)
    out = pl.pallas_call(
        kernel,
        out_shape=jax.ShapeDtypeStruct((B, Cout, HW), x_nchw.dtype),
        grid=(B,),
        in_specs=in_specs,
        out_specs=pl.BlockSpec((1, Cout, HW), lambda b: (b, 0, 0)),
        compiler_params=pltpu.CompilerParams(
            dimension_semantics=("parallel",)),
    )(*args)
    return out.reshape(B, Cout, H, W)                          # lane-dense store -> NCHW


# --------------------------------------------------------------------------
# Parameters: raw (PyTorch layout) + inference-time BN folding
# --------------------------------------------------------------------------
def init_resblock_params(key, in_channels, out_channels, ksize=3):
    """Deterministic synthetic raw parameters in PyTorch layout."""
    ks = jax.random.split(key, 16)

    def conv_w(k, cin, cout, ksz):
        return jax.random.normal(k, (cout, cin, ksz, ksz), jnp.float32) * 0.1

    def bn(k0, k1, k2, k3, c):
        return dict(
            gamma=jax.random.uniform(k0, (c,), jnp.float32, 0.5, 1.5),
            beta=jax.random.normal(k1, (c,), jnp.float32) * 0.1,
            mean=jax.random.normal(k2, (c,), jnp.float32) * 0.1,
            var=jax.random.uniform(k3, (c,), jnp.float32, 0.5, 1.5),
        )

    raw = {
        "w0": conv_w(ks[0], in_channels, out_channels, ksize),
        "bn0": bn(ks[1], ks[2], ks[3], ks[4], out_channels),
        "w1": conv_w(ks[5], out_channels, out_channels, ksize),
        "bn1": bn(ks[6], ks[7], ks[8], ks[9], out_channels),
    }
    if in_channels != out_channels:
        raw["w_id"] = conv_w(ks[10], in_channels, out_channels, 1)
        raw["bn_id"] = bn(ks[11], ks[12], ks[13], ks[14], out_channels)
    return raw


def _bn_scale_shift(bn):
    scale = bn["gamma"] / jnp.sqrt(bn["var"] + EPS)
    shift = bn["beta"] - bn["mean"] * scale
    return scale, shift


def fold_resblock_params(raw):
    """Fold inference BN scale into conv weights (shift stays as a bias);
    re-lay-out weights per tap as (K*K, Cout, Cin) for (Cout,Cin)@(Cin,H*W) matmuls."""
    def fold_conv(w, bn):
        scale, shift = _bn_scale_shift(bn)
        cout, cin, kh, kw = w.shape
        wt = jnp.transpose(w, (2, 3, 0, 1)).reshape(kh * kw, cout, cin)
        return wt * scale[None, :, None], shift.reshape(cout, 1)

    folded = {}
    folded["w0"], folded["b0"] = fold_conv(raw["w0"], raw["bn0"])
    folded["w1"], folded["b1"] = fold_conv(raw["w1"], raw["bn1"])
    if "w_id" in raw:
        w_id, b_id = fold_conv(raw["w_id"], raw["bn_id"])
        folded["w_id"] = w_id[0]          # (Cout, Cin): single 1x1 tap
        folded["b_id"] = b_id
    return folded


# --------------------------------------------------------------------------
# Pure-JAX reference (uses the raw, unfolded parameters)
# --------------------------------------------------------------------------
def _ref_conv_bn(x, w, bn, relu):
    pad = (w.shape[-1] - 1) // 2
    y = lax.conv_general_dilated(
        x, w, window_strides=(1, 1), padding=[(pad, pad), (pad, pad)],
        dimension_numbers=("NCHW", "OIHW", "NCHW"),
        precision=lax.Precision.HIGHEST)
    scale, shift = _bn_scale_shift(bn)
    y = y * scale.reshape(1, -1, 1, 1) + shift.reshape(1, -1, 1, 1)
    return jnp.maximum(y, 0.0) if relu else y


def resblock_reference(x_nchw, raw):
    h = _ref_conv_bn(x_nchw, raw["w0"], raw["bn0"], relu=True)
    if "w_id" in raw:
        identity = _ref_conv_bn(x_nchw, raw["w_id"], raw["bn_id"], relu=False)
    else:
        identity = x_nchw
    out = _ref_conv_bn(h, raw["w1"], raw["bn1"], relu=False) + identity
    return jnp.maximum(out, 0.0)


if __name__ == "__main__":
    B, Cin, Cout, H, W = 2, 4, 8, 16, 16
    key = jax.random.PRNGKey(0)
    k_x, k_p = jax.random.split(key)

    x = jax.random.normal(k_x, (B, Cin, H, W), jnp.float32)
    raw = init_resblock_params(k_p, Cin, Cout, ksize=3)
    folded = fold_resblock_params(raw)

    out = resblock_forward(x, folded, ksize=3)
    out = jax.block_until_ready(out)

    ref = resblock_reference(x, raw)
    assert out.shape == (B, Cout, H, W), out.shape
    max_err = float(jnp.max(jnp.abs(out - ref)))
    assert jnp.allclose(out, ref, rtol=1e-2, atol=1e-2), max_err

    print("KERNEL_OK")
</pallas_src>

<mosaic_0001>
module attributes {stable_mosaic.version = 11 : i64} {
  func.func @kernel(%arg0: i32, %arg1: memref<1x4x256xf32, #tpu.memory_space<vmem>>, %arg2: memref<9x1x256xf32, #tpu.memory_space<vmem>>, %arg3: memref<9x8x4xf32, #tpu.memory_space<vmem>>, %arg4: memref<8x1xf32, #tpu.memory_space<vmem>>, %arg5: memref<9x8x8xf32, #tpu.memory_space<vmem>>, %arg6: memref<8x1xf32, #tpu.memory_space<vmem>>, %arg7: memref<8x4xf32, #tpu.memory_space<vmem>>, %arg8: memref<8x1xf32, #tpu.memory_space<vmem>>, %arg9: memref<1x8x256xf32, #tpu.memory_space<vmem>>) attributes {dimension_semantics = [#tpu.dimension_semantics<parallel>], iteration_bounds = array<i64: 2>, scalar_prefetch = 0 : i64, scratch_operands = 0 : i64, tpu.core_type = #tpu.core_type<tc>, window_params = [{transform_indices = @transform_0, window_bounds = array<i64: 1, 4, 256>}, {pipeline_mode = #tpu.pipeline_mode<synchronous>, transform_indices = @transform_1, window_bounds = array<i64: 9, 1, 256>}, {pipeline_mode = #tpu.pipeline_mode<synchronous>, transform_indices = @transform_2, window_bounds = array<i64: 9, 8, 4>}, {pipeline_mode = #tpu.pipeline_mode<synchronous>, transform_indices = @transform_3, window_bounds = array<i64: 8, 1>}, {pipeline_mode = #tpu.pipeline_mode<synchronous>, transform_indices = @transform_4, window_bounds = array<i64: 9, 8, 8>}, {pipeline_mode = #tpu.pipeline_mode<synchronous>, transform_indices = @transform_5, window_bounds = array<i64: 8, 1>}, {pipeline_mode = #tpu.pipeline_mode<synchronous>, transform_indices = @transform_6, window_bounds = array<i64: 8, 4>}, {pipeline_mode = #tpu.pipeline_mode<synchronous>, transform_indices = @transform_7, window_bounds = array<i64: 8, 1>}, {transform_indices = @transform_8, window_bounds = array<i64: 1, 8, 256>}]} {
    %c0 = arith.constant 0 : index
    %c0_0 = arith.constant 0 : index
    %c0_1 = arith.constant 0 : index
    %0 = vector.load %arg1[%c0, %c0_0, %c0_1] : memref<1x4x256xf32, #tpu.memory_space<vmem>>, vector<1x4x256xf32>
    %1 = vector.shape_cast %0 : vector<1x4x256xf32> to vector<4x256xf32>
    %cst = arith.constant 0.000000e+00 : f32
    %2 = vector.broadcast %cst : f32 to vector<8x256xf32>
    %c17_i32 = arith.constant 17 : i32
    %3 = tpu.dynamic_rotate %1 by %c17_i32 dim 1 : vector<4x256xf32>, i32 -> vector<4x256xf32>
    %c0_2 = arith.constant 0 : index
    %c0_3 = arith.constant 0 : index
    %c0_4 = arith.constant 0 : index
    %4 = vector.load %arg2[%c0_2, %c0_3, %c0_4] : memref<9x1x256xf32, #tpu.memory_space<vmem>>, vector<1x1x256xf32>
    %5 = vector.shape_cast %4 : vector<1x1x256xf32> to vector<1x256xf32>
    %6 = vector.broadcast %5 : vector<1x256xf32> to vector<4x256xf32>
    %7 = arith.mulf %3, %6 : vector<4x256xf32>
    %c0_5 = arith.constant 0 : index
    %c0_6 = arith.constant 0 : index
    %c0_7 = arith.constant 0 : index
    %8 = vector.load %arg3[%c0_5, %c0_6, %c0_7] : memref<9x8x4xf32, #tpu.memory_space<vmem>>, vector<1x8x4xf32>
    %9 = vector.shape_cast %8 : vector<1x8x4xf32> to vector<8x4xf32>
    %cst_8 = arith.constant dense<0.000000e+00> : vector<8x256xf32>
    %10 = tpu.matmul %9, %7, %cst_8 {dimension_numbers = #tpu.dot_dimension_numbers<[1], [0], [0], [1], [0, 0, 1, 1], [], []>} : vector<8x4xf32>, vector<4x256xf32>, vector<8x256xf32> -> vector<8x256xf32>
    %11 = arith.addf %2, %10 : vector<8x256xf32>
    %c16_i32 = arith.constant 16 : i32
    %12 = tpu.dynamic_rotate %1 by %c16_i32 dim 1 : vector<4x256xf32>, i32 -> vector<4x256xf32>
    %c1 = arith.constant 1 : index
    %c0_9 = arith.constant 0 : index
    %c0_10 = arith.constant 0 : index
    %13 = vector.load %arg2[%c1, %c0_9, %c0_10] : memref<9x1x256xf32, #tpu.memory_space<vmem>>, vector<1x1x256xf32>
    %14 = vector.shape_cast %13 : vector<1x1x256xf32> to vector<1x256xf32>
    %15 = vector.broadcast %14 : vector<1x256xf32> to vector<4x256xf32>
    %16 = arith.mulf %12, %15 : vector<4x256xf32>
    %c1_11 = arith.constant 1 : index
    %c0_12 = arith.constant 0 : index
    %c0_13 = arith.constant 0 : index
    %17 = vector.load %arg3[%c1_11, %c0_12, %c0_13] : memref<9x8x4xf32, #tpu.memory_space<vmem>>, vector<1x8x4xf32>
    %18 = vector.shape_cast %17 : vector<1x8x4xf32> to vector<8x4xf32>
    %cst_14 = arith.constant dense<0.000000e+00> : vector<8x256xf32>
    %19 = tpu.matmul %18, %16, %cst_14 {dimension_numbers = #tpu.dot_dimension_numbers<[1], [0], [0], [1], [0, 0, 1, 1], [], []>} : vector<8x4xf32>, vector<4x256xf32>, vector<8x256xf32> -> vector<8x256xf32>
    %20 = arith.addf %11, %19 : vector<8x256xf32>
    %c15_i32 = arith.constant 15 : i32
    %21 = tpu.dynamic_rotate %1 by %c15_i32 dim 1 : vector<4x256xf32>, i32 -> vector<4x256xf32>
    %c2 = arith.constant 2 : index
    %c0_15 = arith.constant 0 : index
    %c0_16 = arith.constant 0 : index
    %22 = vector.load %arg2[%c2, %c0_15, %c0_16] : memref<9x1x256xf32, #tpu.memory_space<vmem>>, vector<1x1x256xf32>
    %23 = vector.shape_cast %22 : vector<1x1x256xf32> to vector<1x256xf32>
    %24 = vector.broadcast %23 : vector<1x256xf32> to vector<4x256xf32>
    %25 = arith.mulf %21, %24 : vector<4x256xf32>
    %c2_17 = arith.constant 2 : index
    %c0_18 = arith.constant 0 : index
    %c0_19 = arith.constant 0 : index
    %26 = vector.load %arg3[%c2_17, %c0_18, %c0_19] : memref<9x8x4xf32, #tpu.memory_space<vmem>>, vector<1x8x4xf32>
    %27 = vector.shape_cast %26 : vector<1x8x4xf32> to vector<8x4xf32>
    %cst_20 = arith.constant dense<0.000000e+00> : vector<8x256xf32>
    %28 = tpu.matmul %27, %25, %cst_20 {dimension_numbers = #tpu.dot_dimension_numbers<[1], [0], [0], [1], [0, 0, 1, 1], [], []>} : vector<8x4xf32>, vector<4x256xf32>, vector<8x256xf32> -> vector<8x256xf32>
    %29 = arith.addf %20, %28 : vector<8x256xf32>
    %c1_i32 = arith.constant 1 : i32
    %30 = tpu.dynamic_rotate %1 by %c1_i32 dim 1 : vector<4x256xf32>, i32 -> vector<4x256xf32>
    %c3 = arith.constant 3 : index
    %c0_21 = arith.constant 0 : index
    %c0_22 = arith.constant 0 : index
    %31 = vector.load %arg2[%c3, %c0_21, %c0_22] : memref<9x1x256xf32, #tpu.memory_space<vmem>>, vector<1x1x256xf32>
    %32 = vector.shape_cast %31 : vector<1x1x256xf32> to vector<1x256xf32>
    %33 = vector.broadcast %32 : vector<1x256xf32> to vector<4x256xf32>
    %34 = arith.mulf %30, %33 : vector<4x256xf32>
    %c3_23 = arith.constant 3 : index
    %c0_24 = arith.constant 0 : index
    %c0_25 = arith.constant 0 : index
    %35 = vector.load %arg3[%c3_23, %c0_24, %c0_25] : memref<9x8x4xf32, #tpu.memory_space<vmem>>, vector<1x8x4xf32>
    %36 = vector.shape_cast %35 : vector<1x8x4xf32> to vector<8x4xf32>
    %cst_26 = arith.constant dense<0.000000e+00> : vector<8x256xf32>
    %37 = tpu.matmul %36, %34, %cst_26 {dimension_numbers = #tpu.dot_dimension_numbers<[1], [0], [0], [1], [0, 0, 1, 1], [], []>} : vector<8x4xf32>, vector<4x256xf32>, vector<8x256xf32> -> vector<8x256xf32>
    %38 = arith.addf %29, %37 : vector<8x256xf32>
    %c4 = arith.constant 4 : index
    %c0_27 = arith.constant 0 : index
    %c0_28 = arith.constant 0 : index
    %39 = vector.load %arg3[%c4, %c0_27, %c0_28] : memref<9x8x4xf32, #tpu.memory_space<vmem>>, vector<1x8x4xf32>
    %40 = vector.shape_cast %39 : vector<1x8x4xf32> to vector<8x4xf32>
    %cst_29 = arith.constant dense<0.000000e+00> : vector<8x256xf32>
    %41 = tpu.matmul %40, %1, %cst_29 {dimension_numbers = #tpu.dot_dimension_numbers<[1], [0], [0], [1], [0, 0, 1, 1], [], []>} : vector<8x4xf32>, vector<4x256xf32>, vector<8x256xf32> -> vector<8x256xf32>
    %42 = arith.addf %38, %41 : vector<8x256xf32>
    %c255_i32 = arith.constant 255 : i32
    %43 = tpu.dynamic_rotate %1 by %c255_i32 dim 1 : vector<4x256xf32>, i32 -> vector<4x256xf32>
    %c5 = arith.constant 5 : index
    %c0_30 = arith.constant 0 : index
    %c0_31 = arith.constant 0 : index
    %44 = vector.load %arg2[%c5, %c0_30, %c0_31] : memref<9x1x256xf32, #tpu.memory_space<vmem>>, vector<1x1x256xf32>
    %45 = vector.shape_cast %44 : vector<1x1x256xf32> to vector<1x256xf32>
    %46 = vector.broadcast %45 : vector<1x256xf32> to vector<4x256xf32>
    %47 = arith.mulf %43, %46 : vector<4x256xf32>
    %c5_32 = arith.constant 5 : index
    %c0_33 = arith.constant 0 : index
    %c0_34 = arith.constant 0 : index
    %48 = vector.load %arg3[%c5_32, %c0_33, %c0_34] : memref<9x8x4xf32, #tpu.memory_space<vmem>>, vector<1x8x4xf32>
    %49 = vector.shape_cast %48 : vector<1x8x4xf32> to vector<8x4xf32>
    %cst_35 = arith.constant dense<0.000000e+00> : vector<8x256xf32>
    %50 = tpu.matmul %49, %47, %cst_35 {dimension_numbers = #tpu.dot_dimension_numbers<[1], [0], [0], [1], [0, 0, 1, 1], [], []>} : vector<8x4xf32>, vector<4x256xf32>, vector<8x256xf32> -> vector<8x256xf32>
    %51 = arith.addf %42, %50 : vector<8x256xf32>
    %c241_i32 = arith.constant 241 : i32
    %52 = tpu.dynamic_rotate %1 by %c241_i32 dim 1 : vector<4x256xf32>, i32 -> vector<4x256xf32>
    %c6 = arith.constant 6 : index
    %c0_36 = arith.constant 0 : index
    %c0_37 = arith.constant 0 : index
    %53 = vector.load %arg2[%c6, %c0_36, %c0_37] : memref<9x1x256xf32, #tpu.memory_space<vmem>>, vector<1x1x256xf32>
    %54 = vector.shape_cast %53 : vector<1x1x256xf32> to vector<1x256xf32>
    %55 = vector.broadcast %54 : vector<1x256xf32> to vector<4x256xf32>
    %56 = arith.mulf %52, %55 : vector<4x256xf32>
    %c6_38 = arith.constant 6 : index
    %c0_39 = arith.constant 0 : index
    %c0_40 = arith.constant 0 : index
    %57 = vector.load %arg3[%c6_38, %c0_39, %c0_40] : memref<9x8x4xf32, #tpu.memory_space<vmem>>, vector<1x8x4xf32>
    %58 = vector.shape_cast %57 : vector<1x8x4xf32> to vector<8x4xf32>
    %cst_41 = arith.constant dense<0.000000e+00> : vector<8x256xf32>
    %59 = tpu.matmul %58, %56, %cst_41 {dimension_numbers = #tpu.dot_dimension_numbers<[1], [0], [0], [1], [0, 0, 1, 1], [], []>} : vector<8x4xf32>, vector<4x256xf32>, vector<8x256xf32> -> vector<8x256xf32>
    %60 = arith.addf %51, %59 : vector<8x256xf32>
    %c240_i32 = arith.constant 240 : i32
    %61 = tpu.dynamic_rotate %1 by %c240_i32 dim 1 : vector<4x256xf32>, i32 -> vector<4x256xf32>
    %c7 = arith.constant 7 : index
    %c0_42 = arith.constant 0 : index
    %c0_43 = arith.constant 0 : index
    %62 = vector.load %arg2[%c7, %c0_42, %c0_43] : memref<9x1x256xf32, #tpu.memory_space<vmem>>, vector<1x1x256xf32>
    %63 = vector.shape_cast %62 : vector<1x1x256xf32> to vector<1x256xf32>
    %64 = vector.broadcast %63 : vector<1x256xf32> to vector<4x256xf32>
    %65 = arith.mulf %61, %64 : vector<4x256xf32>
    %c7_44 = arith.constant 7 : index
    %c0_45 = arith.constant 0 : index
    %c0_46 = arith.constant 0 : index
    %66 = vector.load %arg3[%c7_44, %c0_45, %c0_46] : memref<9x8x4xf32, #tpu.memory_space<vmem>>, vector<1x8x4xf32>
    %67 = vector.shape_cast %66 : vector<1x8x4xf32> to vector<8x4xf32>
    %cst_47 = arith.constant dense<0.000000e+00> : vector<8x256xf32>
    %68 = tpu.matmul %67, %65, %cst_47 {dimension_numbers = #tpu.dot_dimension_numbers<[1], [0], [0], [1], [0, 0, 1, 1], [], []>} : vector<8x4xf32>, vector<4x256xf32>, vector<8x256xf32> -> vector<8x256xf32>
    %69 = arith.addf %60, %68 : vector<8x256xf32>
    %c239_i32 = arith.constant 239 : i32
    %70 = tpu.dynamic_rotate %1 by %c239_i32 dim 1 : vector<4x256xf32>, i32 -> vector<4x256xf32>
    %c8 = arith.constant 8 : index
    %c0_48 = arith.constant 0 : index
    %c0_49 = arith.constant 0 : index
    %71 = vector.load %arg2[%c8, %c0_48, %c0_49] : memref<9x1x256xf32, #tpu.memory_space<vmem>>, vector<1x1x256xf32>
    %72 = vector.shape_cast %71 : vector<1x1x256xf32> to vector<1x256xf32>
    %73 = vector.broadcast %72 : vector<1x256xf32> to vector<4x256xf32>
    %74 = arith.mulf %70, %73 : vector<4x256xf32>
    %c8_50 = arith.constant 8 : index
    %c0_51 = arith.constant 0 : index
    %c0_52 = arith.constant 0 : index
    %75 = vector.load %arg3[%c8_50, %c0_51, %c0_52] : memref<9x8x4xf32, #tpu.memory_space<vmem>>, vector<1x8x4xf32>
    %76 = vector.shape_cast %75 : vector<1x8x4xf32> to vector<8x4xf32>
    %cst_53 = arith.constant dense<0.000000e+00> : vector<8x256xf32>
    %77 = tpu.matmul %76, %74, %cst_53 {dimension_numbers = #tpu.dot_dimension_numbers<[1], [0], [0], [1], [0, 0, 1, 1], [], []>} : vector<8x4xf32>, vector<4x256xf32>, vector<8x256xf32> -> vector<8x256xf32>
    %78 = arith.addf %69, %77 : vector<8x256xf32>
    %c0_54 = arith.constant 0 : index
    %c0_55 = arith.constant 0 : index
    %79 = vector.load %arg4[%c0_54, %c0_55] : memref<8x1xf32, #tpu.memory_space<vmem>>, vector<8x1xf32>
    %80 = vector.broadcast %79 : vector<8x1xf32> to vector<8x256xf32>
    %81 = arith.addf %78, %80 : vector<8x256xf32>
    %cst_56 = arith.constant 0.000000e+00 : f32
    %82 = vector.broadcast %cst_56 : f32 to vector<8x256xf32>
    %83 = arith.maximumf %81, %82 : vector<8x256xf32>
    %c0_57 = arith.constant 0 : index
    %c0_58 = arith.constant 0 : index
    %84 = vector.load %arg7[%c0_57, %c0_58] : memref<8x4xf32, #tpu.memory_space<vmem>>, vector<8x4xf32>
    %cst_59 = arith.constant dense<0.000000e+00> : vector<8x256xf32>
    %85 = tpu.matmul %84, %1, %cst_59 {dimension_numbers = #tpu.dot_dimension_numbers<[1], [0], [0], [1], [0, 0, 1, 1], [], []>} : vector<8x4xf32>, vector<4x256xf32>, vector<8x256xf32> -> vector<8x256xf32>
    %c0_60 = arith.constant 0 : index
    %c0_61 = arith.constant 0 : index
    %86 = vector.load %arg8[%c0_60, %c0_61] : memref<8x1xf32, #tpu.memory_space<vmem>>, vector<8x1xf32>
    %87 = vector.broadcast %86 : vector<8x1xf32> to vector<8x256xf32>
    %88 = arith.addf %85, %87 : vector<8x256xf32>
    %cst_62 = arith.constant 0.000000e+00 : f32
    %89 = vector.broadcast %cst_62 : f32 to vector<8x256xf32>
    %c17_i32_63 = arith.constant 17 : i32
    %90 = tpu.dynamic_rotate %83 by %c17_i32_63 dim 1 : vector<8x256xf32>, i32 -> vector<8x256xf32>
    %c0_64 = arith.constant 0 : index
    %c0_65 = arith.constant 0 : index
    %c0_66 = arith.constant 0 : index
    %91 = vector.load %arg2[%c0_64, %c0_65, %c0_66] : memref<9x1x256xf32, #tpu.memory_space<vmem>>, vector<1x1x256xf32>
    %92 = vector.shape_cast %91 : vector<1x1x256xf32> to vector<1x256xf32>
    %93 = vector.broadcast %92 : vector<1x256xf32> to vector<8x256xf32>
    %94 = arith.mulf %90, %93 : vector<8x256xf32>
    %c0_67 = arith.constant 0 : index
    %c0_68 = arith.constant 0 : index
    %c0_69 = arith.constant 0 : index
    %95 = vector.load %arg5[%c0_67, %c0_68, %c0_69] : memref<9x8x8xf32, #tpu.memory_space<vmem>>, vector<1x8x8xf32>
    %96 = vector.shape_cast %95 : vector<1x8x8xf32> to vector<8x8xf32>
    %cst_70 = arith.constant dense<0.000000e+00> : vector<8x256xf32>
    %97 = tpu.matmul %96, %94, %cst_70 {dimension_numbers = #tpu.dot_dimension_numbers<[1], [0], [0], [1], [0, 0, 1, 1], [], []>} : vector<8x8xf32>, vector<8x256xf32>, vector<8x256xf32> -> vector<8x256xf32>
    %98 = arith.addf %89, %97 : vector<8x256xf32>
    %c16_i32_71 = arith.constant 16 : i32
    %99 = tpu.dynamic_rotate %83 by %c16_i32_71 dim 1 : vector<8x256xf32>, i32 -> vector<8x256xf32>
    %c1_72 = arith.constant 1 : index
    %c0_73 = arith.constant 0 : index
    %c0_74 = arith.constant 0 : index
    %100 = vector.load %arg2[%c1_72, %c0_73, %c0_74] : memref<9x1x256xf32, #tpu.memory_space<vmem>>, vector<1x1x256xf32>
    %101 = vector.shape_cast %100 : vector<1x1x256xf32> to vector<1x256xf32>
    %102 = vector.broadcast %101 : vector<1x256xf32> to vector<8x256xf32>
    %103 = arith.mulf %99, %102 : vector<8x256xf32>
    %c1_75 = arith.constant 1 : index
    %c0_76 = arith.constant 0 : index
    %c0_77 = arith.constant 0 : index
    %104 = vector.load %arg5[%c1_75, %c0_76, %c0_77] : memref<9x8x8xf32, #tpu.memory_space<vmem>>, vector<1x8x8xf32>
    %105 = vector.shape_cast %104 : vector<1x8x8xf32> to vector<8x8xf32>
    %cst_78 = arith.constant dense<0.000000e+00> : vector<8x256xf32>
    %106 = tpu.matmul %105, %103, %cst_78 {dimension_numbers = #tpu.dot_dimension_numbers<[1], [0], [0], [1], [0, 0, 1, 1], [], []>} : vector<8x8xf32>, vector<8x256xf32>, vector<8x256xf32> -> vector<8x256xf32>
    %107 = arith.addf %98, %106 : vector<8x256xf32>
    %c15_i32_79 = arith.constant 15 : i32
    %108 = tpu.dynamic_rotate %83 by %c15_i32_79 dim 1 : vector<8x256xf32>, i32 -> vector<8x256xf32>
    %c2_80 = arith.constant 2 : index
    %c0_81 = arith.constant 0 : index
    %c0_82 = arith.constant 0 : index
    %109 = vector.load %arg2[%c2_80, %c0_81, %c0_82] : memref<9x1x256xf32, #tpu.memory_space<vmem>>, vector<1x1x256xf32>
    %110 = vector.shape_cast %109 : vector<1x1x256xf32> to vector<1x256xf32>
    %111 = vector.broadcast %110 : vector<1x256xf32> to vector<8x256xf32>
    %112 = arith.mulf %108, %111 : vector<8x256xf32>
    %c2_83 = arith.constant 2 : index
    %c0_84 = arith.constant 0 : index
    %c0_85 = arith.constant 0 : index
    %113 = vector.load %arg5[%c2_83, %c0_84, %c0_85] : memref<9x8x8xf32, #tpu.memory_space<vmem>>, vector<1x8x8xf32>
    %114 = vector.shape_cast %113 : vector<1x8x8xf32> to vector<8x8xf32>
    %cst_86 = arith.constant dense<0.000000e+00> : vector<8x256xf32>
    %115 = tpu.matmul %114, %112, %cst_86 {dimension_numbers = #tpu.dot_dimension_numbers<[1], [0], [0], [1], [0, 0, 1, 1], [], []>} : vector<8x8xf32>, vector<8x256xf32>, vector<8x256xf32> -> vector<8x256xf32>
    %116 = arith.addf %107, %115 : vector<8x256xf32>
    %c1_i32_87 = arith.constant 1 : i32
    %117 = tpu.dynamic_rotate %83 by %c1_i32_87 dim 1 : vector<8x256xf32>, i32 -> vector<8x256xf32>
    %c3_88 = arith.constant 3 : index
    %c0_89 = arith.constant 0 : index
    %c0_90 = arith.constant 0 : index
    %118 = vector.load %arg2[%c3_88, %c0_89, %c0_90] : memref<9x1x256xf32, #tpu.memory_space<vmem>>, vector<1x1x256xf32>
    %119 = vector.shape_cast %118 : vector<1x1x256xf32> to vector<1x256xf32>
    %120 = vector.broadcast %119 : vector<1x256xf32> to vector<8x256xf32>
    %121 = arith.mulf %117, %120 : vector<8x256xf32>
    %c3_91 = arith.constant 3 : index
    %c0_92 = arith.constant 0 : index
    %c0_93 = arith.constant 0 : index
    %122 = vector.load %arg5[%c3_91, %c0_92, %c0_93] : memref<9x8x8xf32, #tpu.memory_space<vmem>>, vector<1x8x8xf32>
    %123 = vector.shape_cast %122 : vector<1x8x8xf32> to vector<8x8xf32>
    %cst_94 = arith.constant dense<0.000000e+00> : vector<8x256xf32>
    %124 = tpu.matmul %123, %121, %cst_94 {dimension_numbers = #tpu.dot_dimension_numbers<[1], [0], [0], [1], [0, 0, 1, 1], [], []>} : vector<8x8xf32>, vector<8x256xf32>, vector<8x256xf32> -> vector<8x256xf32>
    %125 = arith.addf %116, %124 : vector<8x256xf32>
    %c4_95 = arith.constant 4 : index
    %c0_96 = arith.constant 0 : index
    %c0_97 = arith.constant 0 : index
    %126 = vector.load %arg5[%c4_95, %c0_96, %c0_97] : memref<9x8x8xf32, #tpu.memory_space<vmem>>, vector<1x8x8xf32>
    %127 = vector.shape_cast %126 : vector<1x8x8xf32> to vector<8x8xf32>
    %cst_98 = arith.constant dense<0.000000e+00> : vector<8x256xf32>
    %128 = tpu.matmul %127, %83, %cst_98 {dimension_numbers = #tpu.dot_dimension_numbers<[1], [0], [0], [1], [0, 0, 1, 1], [], []>} : vector<8x8xf32>, vector<8x256xf32>, vector<8x256xf32> -> vector<8x256xf32>
    %129 = arith.addf %125, %128 : vector<8x256xf32>
    %c255_i32_99 = arith.constant 255 : i32
    %130 = tpu.dynamic_rotate %83 by %c255_i32_99 dim 1 : vector<8x256xf32>, i32 -> vector<8x256xf32>
    %c5_100 = arith.constant 5 : index
    %c0_101 = arith.constant 0 : index
    %c0_102 = arith.constant 0 : index
    %131 = vector.load %arg2[%c5_100, %c0_101, %c0_102] : memref<9x1x256xf32, #tpu.memory_space<vmem>>, vector<1x1x256xf32>
    %132 = vector.shape_cast %131 : vector<1x1x256xf32> to vector<1x256xf32>
    %133 = vector.broadcast %132 : vector<1x256xf32> to vector<8x256xf32>
    %134 = arith.mulf %130, %133 : vector<8x256xf32>
    %c5_103 = arith.constant 5 : index
    %c0_104 = arith.constant 0 : index
    %c0_105 = arith.constant 0 : index
    %135 = vector.load %arg5[%c5_103, %c0_104, %c0_105] : memref<9x8x8xf32, #tpu.memory_space<vmem>>, vector<1x8x8xf32>
    %136 = vector.shape_cast %135 : vector<1x8x8xf32> to vector<8x8xf32>
    %cst_106 = arith.constant dense<0.000000e+00> : vector<8x256xf32>
    %137 = tpu.matmul %136, %134, %cst_106 {dimension_numbers = #tpu.dot_dimension_numbers<[1], [0], [0], [1], [0, 0, 1, 1], [], []>} : vector<8x8xf32>, vector<8x256xf32>, vector<8x256xf32> -> vector<8x256xf32>
    %138 = arith.addf %129, %137 : vector<8x256xf32>
    %c241_i32_107 = arith.constant 241 : i32
    %139 = tpu.dynamic_rotate %83 by %c241_i32_107 dim 1 : vector<8x256xf32>, i32 -> vector<8x256xf32>
    %c6_108 = arith.constant 6 : index
    %c0_109 = arith.constant 0 : index
    %c0_110 = arith.constant 0 : index
    %140 = vector.load %arg2[%c6_108, %c0_109, %c0_110] : memref<9x1x256xf32, #tpu.memory_space<vmem>>, vector<1x1x256xf32>
    %141 = vector.shape_cast %140 : vector<1x1x256xf32> to vector<1x256xf32>
    %142 = vector.broadcast %141 : vector<1x256xf32> to vector<8x256xf32>
    %143 = arith.mulf %139, %142 : vector<8x256xf32>
    %c6_111 = arith.constant 6 : index
    %c0_112 = arith.constant 0 : index
    %c0_113 = arith.constant 0 : index
    %144 = vector.load %arg5[%c6_111, %c0_112, %c0_113] : memref<9x8x8xf32, #tpu.memory_space<vmem>>, vector<1x8x8xf32>
    %145 = vector.shape_cast %144 : vector<1x8x8xf32> to vector<8x8xf32>
    %cst_114 = arith.constant dense<0.000000e+00> : vector<8x256xf32>
    %146 = tpu.matmul %145, %143, %cst_114 {dimension_numbers = #tpu.dot_dimension_numbers<[1], [0], [0], [1], [0, 0, 1, 1], [], []>} : vector<8x8xf32>, vector<8x256xf32>, vector<8x256xf32> -> vector<8x256xf32>
    %147 = arith.addf %138, %146 : vector<8x256xf32>
    %c240_i32_115 = arith.constant 240 : i32
    %148 = tpu.dynamic_rotate %83 by %c240_i32_115 dim 1 : vector<8x256xf32>, i32 -> vector<8x256xf32>
    %c7_116 = arith.constant 7 : index
    %c0_117 = arith.constant 0 : index
    %c0_118 = arith.constant 0 : index
    %149 = vector.load %arg2[%c7_116, %c0_117, %c0_118] : memref<9x1x256xf32, #tpu.memory_space<vmem>>, vector<1x1x256xf32>
    %150 = vector.shape_cast %149 : vector<1x1x256xf32> to vector<1x256xf32>
    %151 = vector.broadcast %150 : vector<1x256xf32> to vector<8x256xf32>
    %152 = arith.mulf %148, %151 : vector<8x256xf32>
    %c7_119 = arith.constant 7 : index
    %c0_120 = arith.constant 0 : index
    %c0_121 = arith.constant 0 : index
    %153 = vector.load %arg5[%c7_119, %c0_120, %c0_121] : memref<9x8x8xf32, #tpu.memory_space<vmem>>, vector<1x8x8xf32>
    %154 = vector.shape_cast %153 : vector<1x8x8xf32> to vector<8x8xf32>
    %cst_122 = arith.constant dense<0.000000e+00> : vector<8x256xf32>
    %155 = tpu.matmul %154, %152, %cst_122 {dimension_numbers = #tpu.dot_dimension_numbers<[1], [0], [0], [1], [0, 0, 1, 1], [], []>} : vector<8x8xf32>, vector<8x256xf32>, vector<8x256xf32> -> vector<8x256xf32>
    %156 = arith.addf %147, %155 : vector<8x256xf32>
    %c239_i32_123 = arith.constant 239 : i32
    %157 = tpu.dynamic_rotate %83 by %c239_i32_123 dim 1 : vector<8x256xf32>, i32 -> vector<8x256xf32>
    %c8_124 = arith.constant 8 : index
    %c0_125 = arith.constant 0 : index
    %c0_126 = arith.constant 0 : index
    %158 = vector.load %arg2[%c8_124, %c0_125, %c0_126] : memref<9x1x256xf32, #tpu.memory_space<vmem>>, vector<1x1x256xf32>
    %159 = vector.shape_cast %158 : vector<1x1x256xf32> to vector<1x256xf32>
    %160 = vector.broadcast %159 : vector<1x256xf32> to vector<8x256xf32>
    %161 = arith.mulf %157, %160 : vector<8x256xf32>
    %c8_127 = arith.constant 8 : index
    %c0_128 = arith.constant 0 : index
    %c0_129 = arith.constant 0 : index
    %162 = vector.load %arg5[%c8_127, %c0_128, %c0_129] : memref<9x8x8xf32, #tpu.memory_space<vmem>>, vector<1x8x8xf32>
    %163 = vector.shape_cast %162 : vector<1x8x8xf32> to vector<8x8xf32>
    %cst_130 = arith.constant dense<0.000000e+00> : vector<8x256xf32>
    %164 = tpu.matmul %163, %161, %cst_130 {dimension_numbers = #tpu.dot_dimension_numbers<[1], [0], [0], [1], [0, 0, 1, 1], [], []>} : vector<8x8xf32>, vector<8x256xf32>, vector<8x256xf32> -> vector<8x256xf32>
    %165 = arith.addf %156, %164 : vector<8x256xf32>
    %c0_131 = arith.constant 0 : index
    %c0_132 = arith.constant 0 : index
    %166 = vector.load %arg6[%c0_131, %c0_132] : memref<8x1xf32, #tpu.memory_space<vmem>>, vector<8x1xf32>
    %167 = vector.broadcast %166 : vector<8x1xf32> to vector<8x256xf32>
    %168 = arith.addf %165, %167 : vector<8x256xf32>
    %169 = arith.addf %168, %88 : vector<8x256xf32>
    %cst_133 = arith.constant 0.000000e+00 : f32
    %170 = vector.broadcast %cst_133 : f32 to vector<8x256xf32>
    %171 = arith.maximumf %169, %170 : vector<8x256xf32>
    %c0_134 = arith.constant 0 : index
    %c0_135 = arith.constant 0 : index
    %c0_136 = arith.constant 0 : index
    %172 = vector.load %arg9[%c0_134, %c0_135, %c0_136] : memref<1x8x256xf32, #tpu.memory_space<vmem>>, vector<1x8x256xf32>
    %173 = vector.shape_cast %172 : vector<1x8x256xf32> to vector<8x256xf32>
    %174 = vector.shape_cast %171 : vector<8x256xf32> to vector<1x8x256xf32>
    tpu.vector_store %arg9[%c0_134, %c0_135, %c0_136], %174 {strides = array<i32>} : memref<1x8x256xf32, #tpu.memory_space<vmem>>, vector<1x8x256xf32>,
    return
  }
  func.func @transform_0(%arg0: i32) -> (i32, i32, i32) {
    %c0_i32 = arith.constant 0 : i32
    %c0_i32_0 = arith.constant 0 : i32
    %c0_i32_1 = arith.constant 0 : i32
    return %arg0, %c0_i32, %c0_i32_0 : i32, i32, i32
  }
  func.func @transform_1(%arg0: i32) -> (i32, i32, i32) {
    %c0_i32 = arith.constant 0 : i32
    %c0_i32_0 = arith.constant 0 : i32
    %c0_i32_1 = arith.constant 0 : i32
    %c0_i32_2 = arith.constant 0 : i32
    return %c0_i32, %c0_i32_0, %c0_i32_1 : i32, i32, i32
  }
  func.func @transform_2(%arg0: i32) -> (i32, i32, i32) {
    %c0_i32 = arith.constant 0 : i32
    %c0_i32_0 = arith.constant 0 : i32
    %c0_i32_1 = arith.constant 0 : i32
    %c0_i32_2 = arith.constant 0 : i32
    return %c0_i32, %c0_i32_0, %c0_i32_1 : i32, i32, i32
  }
  func.func @transform_3(%arg0: i32) -> (i32, i32) {
    %c0_i32 = arith.constant 0 : i32
    %c0_i32_0 = arith.constant 0 : i32
    %c0_i32_1 = arith.constant 0 : i32
    return %c0_i32, %c0_i32_0 : i32, i32
  }
  func.func @transform_4(%arg0: i32) -> (i32, i32, i32) {
    %c0_i32 = arith.constant 0 : i32
    %c0_i32_0 = arith.constant 0 : i32
    %c0_i32_1 = arith.constant 0 : i32
    %c0_i32_2 = arith.constant 0 : i32
    return %c0_i32, %c0_i32_0, %c0_i32_1 : i32, i32, i32
  }
  func.func @transform_5(%arg0: i32) -> (i32, i32) {
    %c0_i32 = arith.constant 0 : i32
    %c0_i32_0 = arith.constant 0 : i32
    %c0_i32_1 = arith.constant 0 : i32
    return %c0_i32, %c0_i32_0 : i32, i32
  }
  func.func @transform_6(%arg0: i32) -> (i32, i32) {
    %c0_i32 = arith.constant 0 : i32
    %c0_i32_0 = arith.constant 0 : i32
    %c0_i32_1 = arith.constant 0 : i32
    return %c0_i32, %c0_i32_0 : i32, i32
  }
  func.func @transform_7(%arg0: i32) -> (i32, i32) {
    %c0_i32 = arith.constant 0 : i32
    %c0_i32_0 = arith.constant 0 : i32
    %c0_i32_1 = arith.constant 0 : i32
    return %c0_i32, %c0_i32_0 : i32, i32
  }
  func.func @transform_8(%arg0: i32) -> (i32, i32, i32) {
    %c0_i32 = arith.constant 0 : i32
    %c0_i32_0 = arith.constant 0 : i32
    %c0_i32_1 = arith.constant 0 : i32
    return %arg0, %c0_i32, %c0_i32_0 : i32, i32, i32
  }
}

</mosaic_0001>

<llo_original>
// kernel: resblock_forward.1
$region0: #{resblock_forward.1}
  #allocation0 [shape = 'u32[]', space=smem, size = 0x4, offset = 0x4, fixed_abs, tag = 'smem constant byte address 0x4 - core index']
  #allocation1 [shape = 'u32[144,128]{1,0:T(1,128)}', space=vmem, size = 0x12000, scoped, tag = 'internal scratch']
  %s0 = inlined_call_operand.vmem [shape: f32[2,4,256], index: 0, kind: input, shape index: {}]
  %s1 = inlined_call_operand.vmem [shape: f32[9,1,256], index: 1, kind: input, shape index: {}]
  %s2 = inlined_call_operand.vmem [shape: f32[9,8,4], index: 2, kind: input, shape index: {}]
  %s3 = inlined_call_operand.vmem [shape: f32[8,1], index: 3, kind: input, shape index: {}]
  %s4 = inlined_call_operand.vmem [shape: f32[9,8,8], index: 4, kind: input, shape index: {}]
  %s5 = inlined_call_operand.vmem [shape: f32[8,1], index: 5, kind: input, shape index: {}]
  %s6 = inlined_call_operand.vmem [shape: f32[8,4], index: 6, kind: input, shape index: {}]
  %s7 = inlined_call_operand.vmem [shape: f32[8,1], index: 7, kind: input, shape index: {}]
  %s8 = inlined_call_operand.vmem [shape: f32[2,8,256], index: 8, kind: output, shape index: {}]
  %s9 = sld [smem:[#allocation0]]
  $region65: #{resblock_forward.1} parent=0
    _
  %s11 = ssub.s32 1, %s9
  %s12 = scalar_select 0, %s11, %s9
  loop: start=0, step=1, limit=4
  $region2: #{resblock_forward.1} parent=0 // loop_pre_header
    _
  $region3: #{resblock_forward.1} parent=0 // loop_header
    %s14 = sphi 0, %s18
    %p15 = scmp.ge.s32.totalorder %s14, 4
    %s24 = sphi 0, %s26
    %s27 = sphi 0, %s24
    %s28 = sphi 0, %s27
    %s44 = sphi 0, %s28
    %s48 = sphi 0, %s48
    %s50 = sphi 0, %s48
    %s51 = sphi 0, %s50
    %s65 = sphi 0, %s51
    %s69 = sphi 0, %s69
    %s71 = sphi 0, %s69
    %s72 = sphi 0, %s71
    %s86 = sphi 0, %s72
    %s90 = sphi 0, %s90
    %s92 = sphi 0, %s90
    %s93 = sphi 0, %s92
    %s107 = sphi 0, %s93
    %s111 = sphi 0, %s111
    %s113 = sphi 0, %s111
    %s114 = sphi 0, %s113
    %s128 = sphi 0, %s114
    %s132 = sphi 0, %s132
    %s134 = sphi 0, %s132
    %s135 = sphi 0, %s134
    %s149 = sphi 0, %s135
    %s153 = sphi 0, %s153
    %s155 = sphi 0, %s153
    %s156 = sphi 0, %s155
    %s170 = sphi 0, %s156
    %s174 = sphi 0, %s174
    %s176 = sphi 0, %s174
    %s177 = sphi 0, %s176
    %s191 = sphi 0, %s177
    %s197 = sphi 0, %s199
    %s200 = sphi 0, %s197
    %s201 = sphi 0, %s200
    %s217 = sphi 0, %s201
  $region4: #{resblock_forward.1} parent=0 // loop_header_branch
    %17 = sbr.rel (%p15) target = $region8
  $region5: #{resblock_forward.1} parent=0 // loop_body
    %s19 = ssub.s32 %s14, 1
    %s20 = ssub.s32 %s14, 2
    %s21 = sadd.s32 %s14, 1
    %s22 = ssub.s32 %s14, %s21
    %p23 = scmp.eq.s32.totalorder %s22, 0
    %s25 = sadd.s32 %s24, 1
    %s26 = scalar_select %p23, %s24, %s25
    %p29 = pneg %p23
    %p30 = scmp.eq.s32.totalorder %s14, 1
    %p31 = por %p29, %p30
    %p32 = scmp.ne.s32.totalorder %s24, %s27
    %p33 = scmp.eq.s32.totalorder %s14, 0
    %p34 = por %p32, %p33
    %p35 = scmp.ne.s32.totalorder %s24, %s27
    %p36 = scmp.eq.s32.totalorder %s19, 1
    %p37 = por %p35, %p36
    %p38 = scmp.ne.s32.totalorder %s27, %s28
    %p39 = scmp.eq.s32.totalorder %s19, 0
    %p40 = por %p38, %p39
    %p41 = scmp.ne.s32.totalorder %s27, %s28
    %p42 = scmp.eq.s32.totalorder %s20, 1
    %p43 = por %p41, %p42
    %p45 = scmp.ne.s32.totalorder %s28, %s44
    %p46 = scmp.eq.s32.totalorder %s20, 0
    %p47 = por %p45, %p46
    %s49 = sadd.s32 %s48, 1
    %p52 = scmp.eq.s32.totalorder %s14, 1
    %p53 = scmp.ne.s32.totalorder %s48, %s50
    %p54 = scmp.eq.s32.totalorder %s14, 0
    %p55 = por %p53, %p54
    %p56 = scmp.ne.s32.totalorder %s48, %s50
    %p57 = scmp.eq.s32.totalorder %s19, 1
    %p58 = por %p56, %p57
    %p59 = scmp.ne.s32.totalorder %s50, %s51
    %p60 = scmp.eq.s32.totalorder %s19, 0
    %p61 = por %p59, %p60
    %p62 = scmp.ne.s32.totalorder %s50, %s51
    %p63 = scmp.eq.s32.totalorder %s20, 1
    %p64 = por %p62, %p63
    %p66 = scmp.ne.s32.totalorder %s51, %s65
    %p67 = scmp.eq.s32.totalorder %s20, 0
    %p68 = por %p66, %p67
    %s70 = sadd.s32 %s69, 1
    %p73 = scmp.eq.s32.totalorder %s14, 1
    %p74 = scmp.ne.s32.totalorder %s69, %s71
    %p75 = scmp.eq.s32.totalorder %s14, 0
    %p76 = por %p74, %p75
    %p77 = scmp.ne.s32.totalorder %s69, %s71
    %p78 = scmp.eq.s32.totalorder %s19, 1
    %p79 = por %p77, %p78
    %p80 = scmp.ne.s32.totalorder %s71, %s72
    %p81 = scmp.eq.s32.totalorder %s19, 0
    %p82 = por %p80, %p81
    %p83 = scmp.ne.s32.totalorder %s71, %s72
    %p84 = scmp.eq.s32.totalorder %s20, 1
    %p85 = por %p83, %p84
    %p87 = scmp.ne.s32.totalorder %s72, %s86
    %p88 = scmp.eq.s32.totalorder %s20, 0
    %p89 = por %p87, %p88
    %s91 = sadd.s32 %s90, 1
    %p94 = scmp.eq.s32.totalorder %s14, 1
    %p95 = scmp.ne.s32.totalorder %s90, %s92
    %p96 = scmp.eq.s32.totalorder %s14, 0
    %p97 = por %p95, %p96
    %p98 = scmp.ne.s32.totalorder %s90, %s92
    %p99 = scmp.eq.s32.totalorder %s19, 1
    %p100 = por %p98, %p99
    %p101 = scmp.ne.s32.totalorder %s92, %s93
    %p102 = scmp.eq.s32.totalorder %s19, 0
    %p103 = por %p101, %p102
    %p104 = scmp.ne.s32.totalorder %s92, %s93
    %p105 = scmp.eq.s32.totalorder %s20, 1
    %p106 = por %p104, %p105
    %p108 = scmp.ne.s32.totalorder %s93, %s107
    %p109 = scmp.eq.s32.totalorder %s20, 0
    %p110 = por %p108, %p109
    %s112 = sadd.s32 %s111, 1
    %p115 = scmp.eq.s32.totalorder %s14, 1
    %p116 = scmp.ne.s32.totalorder %s111, %s113
    %p117 = scmp.eq.s32.totalorder %s14, 0
    %p118 = por %p116, %p117
    %p119 = scmp.ne.s32.totalorder %s111, %s113
    %p120 = scmp.eq.s32.totalorder %s19, 1
    %p121 = por %p119, %p120
    %p122 = scmp.ne.s32.totalorder %s113, %s114
    %p123 = scmp.eq.s32.totalorder %s19, 0
    %p124 = por %p122, %p123
    %p125 = scmp.ne.s32.totalorder %s113, %s114
    %p126 = scmp.eq.s32.totalorder %s20, 1
    %p127 = por %p125, %p126
    %p129 = scmp.ne.s32.totalorder %s114, %s128
    %p130 = scmp.eq.s32.totalorder %s20, 0
    %p131 = por %p129, %p130
    %s133 = sadd.s32 %s132, 1
    %p136 = scmp.eq.s32.totalorder %s14, 1
    %p137 = scmp.ne.s32.totalorder %s132, %s134
    %p138 = scmp.eq.s32.totalorder %s14, 0
    %p139 = por %p137, %p138
    %p140 = scmp.ne.s32.totalorder %s132, %s134
    %p141 = scmp.eq.s32.totalorder %s19, 1
    %p142 = por %p140, %p141
    %p143 = scmp.ne.s32.totalorder %s134, %s135
    %p144 = scmp.eq.s32.totalorder %s19, 0
    %p145 = por %p143, %p144
    %p146 = scmp.ne.s32.totalorder %s134, %s135
    %p147 = scmp.eq.s32.totalorder %s20, 1
    %p148 = por %p146, %p147
    %p150 = scmp.ne.s32.totalorder %s135, %s149
    %p151 = scmp.eq.s32.totalorder %s20, 0
    %p152 = por %p150, %p151
    %s154 = sadd.s32 %s153, 1
    %p157 = scmp.eq.s32.totalorder %s14, 1
    %p158 = scmp.ne.s32.totalorder %s153, %s155
    %p159 = scmp.eq.s32.totalorder %s14, 0
    %p160 = por %p158, %p159
    %p161 = scmp.ne.s32.totalorder %s153, %s155
    %p162 = scmp.eq.s32.totalorder %s19, 1
    %p163 = por %p161, %p162
    %p164 = scmp.ne.s32.totalorder %s155, %s156
    %p165 = scmp.eq.s32.totalorder %s19, 0
    %p166 = por %p164, %p165
    %p167 = scmp.ne.s32.totalorder %s155, %s156
    %p168 = scmp.eq.s32.totalorder %s20, 1
    %p169 = por %p167, %p168
    %p171 = scmp.ne.s32.totalorder %s156, %s170
    %p172 = scmp.eq.s32.totalorder %s20, 0
    %p173 = por %p171, %p172
    %s175 = sadd.s32 %s174, 1
    %p178 = scmp.eq.s32.totalorder %s14, 1
    %p179 = scmp.ne.s32.totalorder %s174, %s176
    %p180 = scmp.eq.s32.totalorder %s14, 0
    %p181 = por %p179, %p180
    %p182 = scmp.ne.s32.totalorder %s174, %s176
    %p183 = scmp.eq.s32.totalorder %s19, 1
    %p184 = por %p182, %p183
    %p185 = scmp.ne.s32.totalorder %s176, %s177
    %p186 = scmp.eq.s32.totalorder %s19, 0
    %p187 = por %p185, %p186
    %p188 = scmp.ne.s32.totalorder %s176, %s177
    %p189 = scmp.eq.s32.totalorder %s20, 1
    %p190 = por %p188, %p189
    %p192 = scmp.ne.s32.totalorder %s177, %s191
    %p193 = scmp.eq.s32.totalorder %s20, 0
    %p194 = por %p192, %p193
    %s195 = ssub.s32 %s14, %s21
    %p196 = scmp.eq.s32.totalorder %s195, 0
    %s198 = sadd.s32 %s197, 1
    %s199 = scalar_select %p196, %s197, %s198
    %p202 = pneg %p196
    %p203 = scmp.eq.s32.totalorder %s14, 1
    %p204 = por %p202, %p203
    %p205 = scmp.ne.s32.totalorder %s197, %s200
    %p206 = scmp.eq.s32.totalorder %s14, 0
    %p207 = por %p205, %p206
    %p208 = scmp.ne.s32.totalorder %s197, %s200
    %p209 = scmp.eq.s32.totalorder %s19, 1
    %p210 = por %p208, %p209
    %p211 = scmp.ne.s32.totalorder %s200, %s201
    %p212 = scmp.eq.s32.totalorder %s19, 0
    %p213 = por %p211, %p212
    %p214 = scmp.ne.s32.totalorder %s200, %s201
    %p215 = scmp.eq.s32.totalorder %s20, 1
    %p216 = por %p214, %p215
    %p218 = scmp.ne.s32.totalorder %s201, %s217
    %p219 = scmp.eq.s32.totalorder %s20, 0
    %p220 = por %p218, %p219
    %p221 = scmp.le.s32.totalorder 1, %s14
    %p222 = scmp.lt.s32.totalorder %s14, 3
    %p223 = pnand %p221, %p222
    %p224 = pneg %p223
    // Predicated region
    $region9: #{resblock_forward.1} parent=5 // pred_check
      _
    $region10: #{resblock_forward.1} parent=5 // pred_check_branch
      %226 = sbr.rel (%p223) target = $region12
    $region11: #{resblock_forward.1} parent=5 // pred_region
      %s227 = ssub.s32 %s14, 1
      // Predicated region
      $region13: #{resblock_forward.1} parent=11 // pred_check
        %p228 = pneg %p61
      $region14: #{resblock_forward.1} parent=11 // pred_check_branch
        %230 = sbr.rel (%p228) target = $region16
      $region15: #{resblock_forward.1} parent=11 // pred_region
        _
      $region16: #{resblock_forward.1} parent=11 // pred_fallthru
        _
      // Predicated region
      $region17: #{resblock_forward.1} parent=11 // pred_check
        %p231 = pneg %p82
      $region18: #{resblock_forward.1} parent=11 // pred_check_branch
        %233 = sbr.rel (%p231) target = $region20
      $region19: #{resblock_forward.1} parent=11 // pred_region
        _
      $region20: #{resblock_forward.1} parent=11 // pred_fallthru
        _
      // Predicated region
      $region21: #{resblock_forward.1} parent=11 // pred_check
        %p234 = pneg %p103
      $region22: #{resblock_forward.1} parent=11 // pred_check_branch
        %236 = sbr.rel (%p234) target = $region24
      $region23: #{resblock_forward.1} parent=11 // pred_region
        _
      $region24: #{resblock_forward.1} parent=11 // pred_fallthru
        _
      // Predicated region
      $region25: #{resblock_forward.1} parent=11 // pred_check
        %p237 = pneg %p124
      $region26: #{resblock_forward.1} parent=11 // pred_check_branch
        %239 = sbr.rel (%p237) target = $region28
      $region27: #{resblock_forward.1} parent=11 // pred_region
        _
      $region28: #{resblock_forward.1} parent=11 // pred_fallthru
        _
      // Predicated region
      $region29: #{resblock_forward.1} parent=11 // pred_check
        %p240 = pneg %p145
      $region30: #{resblock_forward.1} parent=11 // pred_check_branch
        %242 = sbr.rel (%p240) target = $region32
      $region31: #{resblock_forward.1} parent=11 // pred_region
        _
      $region32: #{resblock_forward.1} parent=11 // pred_fallthru
        _
      // Predicated region
      $region33: #{resblock_forward.1} parent=11 // pred_check
        %p243 = pneg %p166
      $region34: #{resblock_forward.1} parent=11 // pred_check_branch
        %245 = sbr.rel (%p243) target = $region36
      $region35: #{resblock_forward.1} parent=11 // pred_region
        _
      $region36: #{resblock_forward.1} parent=11 // pred_fallthru
        _
      // Predicated region
      $region37: #{resblock_forward.1} parent=11 // pred_check
        %p246 = pneg %p187
      $region38: #{resblock_forward.1} parent=11 // pred_check_branch
        %248 = sbr.rel (%p246) target = $region40
      $region39: #{resblock_forward.1} parent=11 // pred_region
        _
      $region40: #{resblock_forward.1} parent=11 // pred_fallthru
        _
    $region12: #{resblock_forward.1} parent=5 // pred_fallthru
      _
    %p249 = scmp.lt.s32.totalorder %s14, 2
    // Predicated region
    $region41: #{resblock_forward.1} parent=5 // pred_check
      %p250 = pneg %p249
    $region42: #{resblock_forward.1} parent=5 // pred_check_branch
      %252 = sbr.rel (%p250) target = $region44
    $region43: #{resblock_forward.1} parent=5 // pred_region
      // Predicated region
      $region45: #{resblock_forward.1} parent=43 // pred_check
        %p253 = pneg %p34
      $region46: #{resblock_forward.1} parent=43 // pred_check_branch
        %255 = sbr.rel (%p253) target = $region48
      $region47: #{resblock_forward.1} parent=43 // pred_region
        %p256 = scmp.lt.s32.totalorder %s14, 1
        %s257 = scalar_select %p256, %s14, 1
        %s258 = smul.addr %s257, 2
        %s259 = smul.addr %s258, 4
        %s260 = scalar_lea.vmem %s0, %s259
      $region48: #{resblock_forward.1} parent=43 // pred_fallthru
        _
    $region44: #{resblock_forward.1} parent=5 // pred_fallthru
      _
    %p261 = scmp.le.s32.totalorder 1, %s14
    %p262 = scmp.lt.s32.totalorder %s14, 3
    %p263 = pnand %p261, %p262
    %p264 = pneg %p263
    // Predicated region
    $region49: #{resblock_forward.1} parent=5 // pred_check
      _
    $region50: #{resblock_forward.1} parent=5 // pred_check_branch
      %266 = sbr.rel (%p263) target = $region52
    $region51: #{resblock_forward.1} parent=5 // pred_region
      %s267 = ssub.s32 %s14, 1
      %p268 = scmp.lt.s32.totalorder %s19, 1
      %s269 = scalar_select %p268, %s19, 1
      %s270 = smul.addr %s269, 2
      %s271 = smul.addr %s270, 4
      %s272 = scalar_lea.vmem %s0, %s271
      %p273 = pneg %p40
      %p274 = pneg %p37
      %p275 = pneg %p61
      %p276 = pneg %p58
      %p277 = pneg %p82
      %p278 = pneg %p79
      %p279 = pneg %p103
      %p280 = pneg %p100
      %p281 = pneg %p124
      %p282 = pneg %p121
      %p283 = pneg %p145
      %p284 = pneg %p142
      %p285 = pneg %p166
      %p286 = pneg %p163
      %p287 = pneg %p187
      %p288 = pneg %p184
      %p289 = pneg %p213
      %p290 = pneg %p210
      %p291 = scmp.lt.s32.totalorder %s19, 1
      %s292 = scalar_select %p291, %s19, 1
      %s293 = smul.addr %s292, 2
      %s294 = smul.addr %s293, 8
      %s295 = scalar_lea.vmem %s8, %s294
      %p296 = scmp.lt.s32.totalorder %s19, 1
      %s297 = scalar_select %p296, %s19, 1
      %s298 = smul.addr %s297, 2
      %s299 = smul.addr %s298, 4
      %s300 = scalar_lea.vmem %s0, %s299
      %p301 = scmp.lt.s32.totalorder %s19, 1
      %s302 = scalar_select %p301, %s19, 1
      %s303 = smul.addr %s302, 2
      %s304 = smul.addr %s303, 8
      %s305 = scalar_lea.vmem %s8, %s304
      %v306 = vld [vmem:[%s300] sm:$0xff]
      %v308 = vcombine.high %v306, %v306
      %310 = vrot.lane.b32.xlu0 %v306, 17
      %v311 = vpop.permute.xlu0 %310
      %312 = vrot.lane.b32.xlu0 %v308, 17
      %v313 = vpop.permute.xlu0 %312
      %v314 = vlaneseq
      %v315 = vand.u32 %v314, 127
      %vm316 = vcmp.lt.s32.totalorder %v315, 17
      %v317 = vsel %vm316, %v311, %v313
      %v318 = vsel %vm316, %v313, %v311
      %v319 = vld [vmem:[%s1] sm:$0x3]
      %v321 = vlaneseq
      %v322 = vshrl.u32 %v321, 7
      %v323 = vsub.s32 0, %v322
      %v324 = vrot.slane %v319, %v323
      %v325 = vlaneseq
      %v326 = vshrl.u32 %v325, 7
      %v327 = vsub.s32 1, %v326
      %v328 = vrot.slane %v319, %v327
      %v331 = vmul.f32 %v318, %v324
      %v332 = vmul.f32 %v317, %v328
      %v333 = vld [vmem:[%s2] sm:$0xff]
      %334 = vrot.lane.b32.xlu0 %v306, 16
      %v335 = vpop.permute.xlu0 %334
      %336 = vrot.lane.b32.xlu0 %v308, 16
      %v337 = vpop.permute.xlu0 %336
      %vm338 = vcmp.lt.s32.totalorder %v315, 16
      %v339 = vsel %vm338, %v335, %v337
      %v340 = vsel %vm338, %v337, %v335
      %s341 = scalar_lea.vmem %s1, 2
      %v342 = vld [vmem:[%s341] sm:$0x3]
      %v344 = vlaneseq
      %v345 = vshrl.u32 %v344, 7
      %v346 = vsub.s32 0, %v345
      %v347 = vrot.slane %v342, %v346
      %v348 = vlaneseq
      %v349 = vshrl.u32 %v348, 7
      %v350 = vsub.s32 1, %v349
      %v351 = vrot.slane %v342, %v350
      %v354 = vmul.f32 %v340, %v347
      %v355 = vmul.f32 %v339, %v351
      %s356 = scalar_lea.vmem %s2, 8
      %v357 = vld [vmem:[%s356] sm:$0xff]
      %vm358 = vcmask 31744
      %v360 = vsel %vm358, %v357, 0
      %vm362 = vcmask 1043456
      %v364 = vsel %vm362, %v354, 0
      %v367 = vsel %vm362, %v355, 0
      %369 = vmatprep.subr.mxu0 0.0
      %370 = vmatpush1.msra.mxu0 0.0
      %371 = vmatprep.subr.mxu0 0.0
      %372 = vmatpush1.msra.mxu0 0.0
      %373 = vmatprep.subr.mxu0 0.0
      %374 = vmatpush1.msra.mxu0 0.0
      %375 = vmatprep.subr.mxu0 0.0
      %376 = vmatpush1.msra.mxu0 0.0
      %377 = vmatprep.subr.mxu0 0.0
      %378 = vmatpush1.msra.mxu0 0.0
      %379 = vmatprep.subr.mxu0 0.0
      %380 = vmatpush1.msra.mxu0 0.0
      %381 = vmatprep.subr.mxu0 0.0
      %382 = vmatpush1.msra.mxu0 0.0
      %383 = vmatprep.subr.mxu0 0.0
      %384 = vmatpush1.msra.mxu0 0.0
      %385 = vmatprep.subr.mxu0 0.0
      %386 = vmatpush1.msra.mxu0 0.0
      %387 = vmatprep.subr.mxu0 0.0
      %388 = vmatpush1.msra.mxu0 0.0
      %389 = vmatprep.subr.mxu0 0.0
      %390 = vmatpush1.msra.mxu0 0.0
      %391 = vmatprep.subr.mxu0 0.0
      %392 = vmatpush1.msra.mxu0 0.0
      %393 = vmatprep.subr.mxu0 0.0
      %394 = vmatpush1.msra.mxu0 0.0
      %395 = vmatprep.subr.mxu0 0.0
      %396 = vmatpush1.msra.mxu0 0.0
      %397 = vmatprep.subr.mxu0 0.0
      %398 = vmatpush1.msra.mxu0 0.0
      %399 = vmatprep.subr.mxu0 %v367
      %400 = vmatpush1.msra.mxu0 %v364
      %401 = vmatprep.subr.mxu0 0.0
      %402 = vmatpush2.msra.mxu0 0.0
      %403 = vmatprep.subr.mxu0 0.0
      %404 = vmatpush2.msra.mxu0 0.0
      %405 = vmatprep.subr.mxu0 0.0
      %406 = vmatpush2.msra.mxu0 0.0
      %407 = vmatprep.subr.mxu0 0.0
      %408 = vmatpush2.msra.mxu0 0.0
      %409 = vmatprep.subr.mxu0 0.0
      %410 = vmatpush2.msra.mxu0 0.0
      %411 = vmatprep.subr.mxu0 0.0
      %412 = vmatpush2.msra.mxu0 0.0
      %413 = vmatprep.subr.mxu0 0.0
      %414 = vmatpush2.msra.mxu0 0.0
      %415 = vmatprep.subr.mxu0 0.0
      %416 = vmatpush2.msra.mxu0 0.0
      %417 = vmatprep.subr.mxu0 0.0
      %418 = vmatpush2.msra.mxu0 0.0
      %419 = vmatprep.subr.mxu0 0.0
      %420 = vmatpush2.msra.mxu0 0.0
      %421 = vmatprep.subr.mxu0 0.0
      %422 = vmatpush2.msra.mxu0 0.0
      %423 = vmatprep.subr.mxu0 0.0
      %424 = vmatpush2.msra.mxu0 0.0
      %425 = vmatprep.subr.mxu0 0.0
      %426 = vmatpush2.msra.mxu0 0.0
      %427 = vmatprep.subr.mxu0 0.0
      %428 = vmatpush2.msra.mxu0 0.0
      %429 = vmatprep.subr.mxu0 0.0
      %430 = vmatpush2.msra.mxu0 0.0
      %431 = vmatprep.subr.mxu0 0.0
      %432 = vmatpush2.msra.mxu0 0.0
      %433 = vmatprep.mubr.f32.mxu0 0.0
      %434 = vmatmul.mubr.f32.gmra.mxu0 %v360
      %v435 = vpop.f32.mrf.mxu0
      %v436 = vadd.f32 0.0, %v435
      %v437 = vpop.f32.mrf.mxu0
      %v438 = vadd.f32 0.0, %v437
      %439 = vdwg.mxu0
      %v441 = vsel %vm358, %v333, 0
      %v444 = vsel %vm362, %v331, 0
      %v447 = vsel %vm362, %v332, 0
      %449 = vmatprep.subr.mxu0 0.0
      %450 = vmatpush1.msra.mxu0 0.0
      %451 = vmatprep.subr.mxu0 0.0
      %452 = vmatpush1.msra.mxu0 0.0
      %453 = vmatprep.subr.mxu0 0.0
      %454 = vmatpush1.msra.mxu0 0.0
      %455 = vmatprep.subr.mxu0 0.0
      %456 = vmatpush1.msra.mxu0 0.0
      %457 = vmatprep.subr.mxu0 0.0
      %458 = vmatpush1.msra.mxu0 0.0
      %459 = vmatprep.subr.mxu0 0.0
      %460 = vmatpush1.msra.mxu0 0.0
      %461 = vmatprep.subr.mxu0 0.0
      %462 = vmatpush1.msra.mxu0 0.0
      %463 = vmatprep.subr.mxu0 0.0
      %464 = vmatpush1.msra.mxu0 0.0
      %465 = vmatprep.subr.mxu0 0.0
      %466 = vmatpush1.msra.mxu0 0.0
      %467 = vmatprep.subr.mxu0 0.0
      %468 = vmatpush1.msra.mxu0 0.0
      %469 = vmatprep.subr.mxu0 0.0
      %470 = vmatpush1.msra.mxu0 0.0
      %471 = vmatprep.subr.mxu0 0.0
      %472 = vmatpush1.msra.mxu0 0.0
      %473 = vmatprep.subr.mxu0 0.0
      %474 = vmatpush1.msra.mxu0 0.0
      %475 = vmatprep.subr.mxu0 0.0
      %476 = vmatpush1.msra.mxu0 0.0
      %477 = vmatprep.subr.mxu0 0.0
      %478 = vmatpush1.msra.mxu0 0.0
      %479 = vmatprep.subr.mxu0 %v447
      %480 = vmatpush1.msra.mxu0 %v444
      %481 = vmatprep.subr.mxu0 0.0
      %482 = vmatpush2.msra.mxu0 0.0
      %483 = vmatprep.subr.mxu0 0.0
      %484 = vmatpush2.msra.mxu0 0.0
      %485 = vmatprep.subr.mxu0 0.0
      %486 = vmatpush2.msra.mxu0 0.0
      %487 = vmatprep.subr.mxu0 0.0
      %488 = vmatpush2.msra.mxu0 0.0
      %489 = vmatprep.subr.mxu0 0.0
      %490 = vmatpush2.msra.mxu0 0.0
      %491 = vmatprep.subr.mxu0 0.0
      %492 = vmatpush2.msra.mxu0 0.0
      %493 = vmatprep.subr.mxu0 0.0
      %494 = vmatpush2.msra.mxu0 0.0
      %495 = vmatprep.subr.mxu0 0.0
      %496 = vmatpush2.msra.mxu0 0.0
      %497 = vmatprep.subr.mxu0 0.0
      %498 = vmatpush2.msra.mxu0 0.0
      %499 = vmatprep.subr.mxu0 0.0
      %500 = vmatpush2.msra.mxu0 0.0
      %501 = vmatprep.subr.mxu0 0.0
      %502 = vmatpush2.msra.mxu0 0.0
      %503 = vmatprep.subr.mxu0 0.0
      %504 = vmatpush2.msra.mxu0 0.0
      %505 = vmatprep.subr.mxu0 0.0
      %506 = vmatpush2.msra.mxu0 0.0
      %507 = vmatprep.subr.mxu0 0.0
      %508 = vmatpush2.msra.mxu0 0.0
      %509 = vmatprep.subr.mxu0 0.0
      %510 = vmatpush2.msra.mxu0 0.0
      %511 = vmatprep.subr.mxu0 0.0
      %512 = vmatpush2.msra.mxu0 0.0
      %513 = vmatprep.mubr.f32.mxu0 0.0
      %514 = vmatmul.mubr.f32.gmra.mxu0 %v441
      %v515 = vpop.f32.mrf.mxu0
      %v516 = vadd.f32 %v436, %v515
      %v517 = vpop.f32.mrf.mxu0
      %v518 = vadd.f32 %v438, %v517
      %519 = vdwg.mxu0
      %520 = vrot.lane.b32.xlu0 %v306, 15
      %v521 = vpop.permute.xlu0 %520
      %522 = vrot.lane.b32.xlu0 %v308, 15
      %v523 = vpop.permute.xlu0 %522
      %vm524 = vcmp.lt.s32.totalorder %v315, 15
      %v525 = vsel %vm524, %v521, %v523
      %v526 = vsel %vm524, %v523, %v521
      %s527 = scalar_lea.vmem %s1, 4
      %v528 = vld [vmem:[%s527] sm:$0x3]
      %v530 = vlaneseq
      %v531 = vshrl.u32 %v530, 7
      %v532 = vsub.s32 0, %v531
      %v533 = vrot.slane %v528, %v532
      %v534 = vlaneseq
      %v535 = vshrl.u32 %v534, 7
      %v536 = vsub.s32 1, %v535
      %v537 = vrot.slane %v528, %v536
      %v540 = vmul.f32 %v526, %v533
      %v541 = vmul.f32 %v525, %v537
      %s542 = scalar_lea.vmem %s2, 16
      %v543 = vld [vmem:[%s542] sm:$0xff]
      %v545 = vsel %vm358, %v543, 0
      %v548 = vsel %vm362, %v540, 0
      %v551 = vsel %vm362, %v541, 0
      %553 = vmatprep.subr.mxu0 0.0
      %554 = vmatpush1.msra.mxu0 0.0
      %555 = vmatprep.subr.mxu0 0.0
      %556 = vmatpush1.msra.mxu0 0.0
      %557 = vmatprep.subr.mxu0 0.0
      %558 = vmatpush1.msra.mxu0 0.0
      %559 = vmatprep.subr.mxu0 0.0
      %560 = vmatpush1.msra.mxu0 0.0
      %561 = vmatprep.subr.mxu0 0.0
      %562 = vmatpush1.msra.mxu0 0.0
      %563 = vmatprep.subr.mxu0 0.0
      %564 = vmatpush1.msra.mxu0 0.0
      %565 = vmatprep.subr.mxu0 0.0
      %566 = vmatpush1.msra.mxu0 0.0
      %567 = vmatprep.subr.mxu0 0.0
      %568 = vmatpush1.msra.mxu0 0.0
      %569 = vmatprep.subr.mxu0 0.0
      %570 = vmatpush1.msra.mxu0 0.0
      %571 = vmatprep.subr.mxu0 0.0
      %572 = vmatpush1.msra.mxu0 0.0
      %573 = vmatprep.subr.mxu0 0.0
      %574 = vmatpush1.msra.mxu0 0.0
      %575 = vmatprep.subr.mxu0 0.0
      %576 = vmatpush1.msra.mxu0 0.0
      %577 = vmatprep.subr.mxu0 0.0
      %578 = vmatpush1.msra.mxu0 0.0
      %579 = vmatprep.subr.mxu0 0.0
      %580 = vmatpush1.msra.mxu0 0.0
      %581 = vmatprep.subr.mxu0 0.0
      %582 = vmatpush1.msra.mxu0 0.0
      %583 = vmatprep.subr.mxu0 %v551
      %584 = vmatpush1.msra.mxu0 %v548
      %585 = vmatprep.subr.mxu0 0.0
      %586 = vmatpush2.msra.mxu0 0.0
      %587 = vmatprep.subr.mxu0 0.0
      %588 = vmatpush2.msra.mxu0 0.0
      %589 = vmatprep.subr.mxu0 0.0
      %590 = vmatpush2.msra.mxu0 0.0
      %591 = vmatprep.subr.mxu0 0.0
      %592 = vmatpush2.msra.mxu0 0.0
      %593 = vmatprep.subr.mxu0 0.0
      %594 = vmatpush2.msra.mxu0 0.0
      %595 = vmatprep.subr.mxu0 0.0
      %596 = vmatpush2.msra.mxu0 0.0
      %597 = vmatprep.subr.mxu0 0.0
      %598 = vmatpush2.msra.mxu0 0.0
      %599 = vmatprep.subr.mxu0 0.0
      %600 = vmatpush2.msra.mxu0 0.0
      %601 = vmatprep.subr.mxu0 0.0
      %602 = vmatpush2.msra.mxu0 0.0
      %603 = vmatprep.subr.mxu0 0.0
      %604 = vmatpush2.msra.mxu0 0.0
      %605 = vmatprep.subr.mxu0 0.0
      %606 = vmatpush2.msra.mxu0 0.0
      %607 = vmatprep.subr.mxu0 0.0
      %608 = vmatpush2.msra.mxu0 0.0
      %609 = vmatprep.subr.mxu0 0.0
      %610 = vmatpush2.msra.mxu0 0.0
      %611 = vmatprep.subr.mxu0 0.0
      %612 = vmatpush2.msra.mxu0 0.0
      %613 = vmatprep.subr.mxu0 0.0
      %614 = vmatpush2.msra.mxu0 0.0
      %615 = vmatprep.subr.mxu0 0.0
      %616 = vmatpush2.msra.mxu0 0.0
      %617 = vmatprep.mubr.f32.mxu0 0.0
      %618 = vmatmul.mubr.f32.gmra.mxu0 %v545
      %v619 = vpop.f32.mrf.mxu0
      %v620 = vadd.f32 0.0, %v619
      %v621 = vpop.f32.mrf.mxu0
      %v622 = vadd.f32 0.0, %v621
      %623 = vdwg.mxu0
      %v624 = vadd.f32 %v516, %v620
      %v625 = vadd.f32 %v518, %v622
      %626 = vrot.lane.b32.xlu0 %v306, 1
      %v627 = vpop.permute.xlu0 %626
      %628 = vrot.lane.b32.xlu0 %v308, 1
      %v629 = vpop.permute.xlu0 %628
      %vm630 = vcmp.lt.s32.totalorder %v315, 1
      %v631 = vsel %vm630, %v627, %v629
      %v632 = vsel %vm630, %v629, %v627
      %s633 = scalar_lea.vmem %s1, 6
      %v634 = vld [vmem:[%s633] sm:$0x3]
      %v636 = vlaneseq
      %v637 = vshrl.u32 %v636, 7
      %v638 = vsub.s32 0, %v637
      %v639 = vrot.slane %v634, %v638
      %v640 = vlaneseq
      %v641 = vshrl.u32 %v640, 7
      %v642 = vsub.s32 1, %v641
      %v643 = vrot.slane %v634, %v642
      %v646 = vmul.f32 %v632, %v639
      %v647 = vmul.f32 %v631, %v643
      %s648 = scalar_lea.vmem %s2, 24
      %v649 = vld [vmem:[%s648] sm:$0xff]
      %v651 = vsel %vm358, %v649, 0
      %v654 = vsel %vm362, %v646, 0
      %v657 = vsel %vm362, %v647, 0
      %659 = vmatprep.subr.mxu0 0.0
      %660 = vmatpush1.msra.mxu0 0.0
      %661 = vmatprep.subr.mxu0 0.0
      %662 = vmatpush1.msra.mxu0 0.0
      %663 = vmatprep.subr.mxu0 0.0
      %664 = vmatpush1.msra.mxu0 0.0
      %665 = vmatprep.subr.mxu0 0.0
      %666 = vmatpush1.msra.mxu0 0.0
      %667 = vmatprep.subr.mxu0 0.0
      %668 = vmatpush1.msra.mxu0 0.0
      %669 = vmatprep.subr.mxu0 0.0
      %670 = vmatpush1.msra.mxu0 0.0
      %671 = vmatprep.subr.mxu0 0.0
      %672 = vmatpush1.msra.mxu0 0.0
      %673 = vmatprep.subr.mxu0 0.0
      %674 = vmatpush1.msra.mxu0 0.0
      %675 = vmatprep.subr.mxu0 0.0
      %676 = vmatpush1.msra.mxu0 0.0
      %677 = vmatprep.subr.mxu0 0.0
      %678 = vmatpush1.msra.mxu0 0.0
      %679 = vmatprep.subr.mxu0 0.0
      %680 = vmatpush1.msra.mxu0 0.0
      %681 = vmatprep.subr.mxu0 0.0
      %682 = vmatpush1.msra.mxu0 0.0
      %683 = vmatprep.subr.mxu0 0.0
      %684 = vmatpush1.msra.mxu0 0.0
      %685 = vmatprep.subr.mxu0 0.0
      %686 = vmatpush1.msra.mxu0 0.0
      %687 = vmatprep.subr.mxu0 0.0
      %688 = vmatpush1.msra.mxu0 0.0
      %689 = vmatprep.subr.mxu0 %v657
      %690 = vmatpush1.msra.mxu0 %v654
      %691 = vmatprep.subr.mxu0 0.0
      %692 = vmatpush2.msra.mxu0 0.0
      %693 = vmatprep.subr.mxu0 0.0
      %694 = vmatpush2.msra.mxu0 0.0
      %695 = vmatprep.subr.mxu0 0.0
      %696 = vmatpush2.msra.mxu0 0.0
      %697 = vmatprep.subr.mxu0 0.0
      %698 = vmatpush2.msra.mxu0 0.0
      %699 = vmatprep.subr.mxu0 0.0
      %700 = vmatpush2.msra.mxu0 0.0
      %701 = vmatprep.subr.mxu0 0.0
      %702 = vmatpush2.msra.mxu0 0.0
      %703 = vmatprep.subr.mxu0 0.0
      %704 = vmatpush2.msra.mxu0 0.0
      %705 = vmatprep.subr.mxu0 0.0
      %706 = vmatpush2.msra.mxu0 0.0
      %707 = vmatprep.subr.mxu0 0.0
      %708 = vmatpush2.msra.mxu0 0.0
      %709 = vmatprep.subr.mxu0 0.0
      %710 = vmatpush2.msra.mxu0 0.0
      %711 = vmatprep.subr.mxu0 0.0
      %712 = vmatpush2.msra.mxu0 0.0
      %713 = vmatprep.subr.mxu0 0.0
      %714 = vmatpush2.msra.mxu0 0.0
      %715 = vmatprep.subr.mxu0 0.0
      %716 = vmatpush2.msra.mxu0 0.0
      %717 = vmatprep.subr.mxu0 0.0
      %718 = vmatpush2.msra.mxu0 0.0
      %719 = vmatprep.subr.mxu0 0.0
      %720 = vmatpush2.msra.mxu0 0.0
      %721 = vmatprep.subr.mxu0 0.0
      %722 = vmatpush2.msra.mxu0 0.0
      %723 = vmatprep.mubr.f32.mxu0 0.0
      %724 = vmatmul.mubr.f32.gmra.mxu0 %v651
      %v725 = vpop.f32.mrf.mxu0
      %v726 = vadd.f32 0.0, %v725
      %v727 = vpop.f32.mrf.mxu0
      %v728 = vadd.f32 0.0, %v727
      %729 = vdwg.mxu0
      %v730 = vadd.f32 %v624, %v726
      %v731 = vadd.f32 %v625, %v728
      %s732 = scalar_lea.vmem %s2, 32
      %v733 = vld [vmem:[%s732] sm:$0xff]
      %v735 = vsel %vm358, %v733, 0
      %v737 = vsel %vm362, %v306, 0
      %v739 = vsel %vm362, %v308, 0
      %741 = vmatprep.subr.mxu0 0.0
      %742 = vmatpush1.msra.mxu0 0.0
      %743 = vmatprep.subr.mxu0 0.0
      %744 = vmatpush1.msra.mxu0 0.0
      %745 = vmatprep.subr.mxu0 0.0
      %746 = vmatpush1.msra.mxu0 0.0
      %747 = vmatprep.subr.mxu0 0.0
      %748 = vmatpush1.msra.mxu0 0.0
      %749 = vmatprep.subr.mxu0 0.0
      %750 = vmatpush1.msra.mxu0 0.0
      %751 = vmatprep.subr.mxu0 0.0
      %752 = vmatpush1.msra.mxu0 0.0
      %753 = vmatprep.subr.mxu0 0.0
      %754 = vmatpush1.msra.mxu0 0.0
      %755 = vmatprep.subr.mxu0 0.0
      %756 = vmatpush1.msra.mxu0 0.0
      %757 = vmatprep.subr.mxu0 0.0
      %758 = vmatpush1.msra.mxu0 0.0
      %759 = vmatprep.subr.mxu0 0.0
      %760 = vmatpush1.msra.mxu0 0.0
      %761 = vmatprep.subr.mxu0 0.0
      %762 = vmatpush1.msra.mxu0 0.0
      %763 = vmatprep.subr.mxu0 0.0
      %764 = vmatpush1.msra.mxu0 0.0
      %765 = vmatprep.subr.mxu0 0.0
      %766 = vmatpush1.msra.mxu0 0.0
      %767 = vmatprep.subr.mxu0 0.0
      %768 = vmatpush1.msra.mxu0 0.0
      %769 = vmatprep.subr.mxu0 0.0
      %770 = vmatpush1.msra.mxu0 0.0
      %771 = vmatprep.subr.mxu0 %v739
      %772 = vmatpush1.msra.mxu0 %v737
      %773 = vmatprep.subr.mxu0 0.0
      %774 = vmatpush2.msra.mxu0 0.0
      %775 = vmatprep.subr.mxu0 0.0
      %776 = vmatpush2.msra.mxu0 0.0
      %777 = vmatprep.subr.mxu0 0.0
      %778 = vmatpush2.msra.mxu0 0.0
      %779 = vmatprep.subr.mxu0 0.0
      %780 = vmatpush2.msra.mxu0 0.0
      %781 = vmatprep.subr.mxu0 0.0
      %782 = vmatpush2.msra.mxu0 0.0
      %783 = vmatprep.subr.mxu0 0.0
      %784 = vmatpush2.msra.mxu0 0.0
      %785 = vmatprep.subr.mxu0 0.0
      %786 = vmatpush2.msra.mxu0 0.0
      %787 = vmatprep.subr.mxu0 0.0
      %788 = vmatpush2.msra.mxu0 0.0
      %789 = vmatprep.subr.mxu0 0.0
      %790 = vmatpush2.msra.mxu0 0.0
      %791 = vmatprep.subr.mxu0 0.0
      %792 = vmatpush2.msra.mxu0 0.0
      %793 = vmatprep.subr.mxu0 0.0
      %794 = vmatpush2.msra.mxu0 0.0
      %795 = vmatprep.subr.mxu0 0.0
      %796 = vmatpush2.msra.mxu0 0.0
      %797 = vmatprep.subr.mxu0 0.0
      %798 = vmatpush2.msra.mxu0 0.0
      %799 = vmatprep.subr.mxu0 0.0
      %800 = vmatpush2.msra.mxu0 0.0
      %801 = vmatprep.subr.mxu0 0.0
      %802 = vmatpush2.msra.mxu0 0.0
      %803 = vmatprep.subr.mxu0 0.0
      %804 = vmatpush2.msra.mxu0 0.0
      %805 = vmatprep.mubr.f32.mxu0 0.0
      %806 = vmatmul.mubr.f32.gmra.mxu0 %v735
      %v807 = vpop.f32.mrf.mxu0
      %v808 = vadd.f32 0.0, %v807
      %v809 = vpop.f32.mrf.mxu0
      %v810 = vadd.f32 0.0, %v809
      %811 = vdwg.mxu0
      %v812 = vadd.f32 %v730, %v808
      %v813 = vadd.f32 %v731, %v810
      %814 = vrot.lane.b32.xlu0 %v306, 127
      %v815 = vpop.permute.xlu0 %814
      %816 = vrot.lane.b32.xlu0 %v308, 127
      %v817 = vpop.permute.xlu0 %816
      %vm818 = vcmp.lt.s32.totalorder %v315, 127
      %v819 = vsel %vm818, %v815, %v817
      %v820 = vsel %vm818, %v817, %v815
      %s821 = scalar_lea.vmem %s1, 10
      %v822 = vld [vmem:[%s821] sm:$0x3]
      %v824 = vlaneseq
      %v825 = vshrl.u32 %v824, 7
      %v826 = vsub.s32 0, %v825
      %v827 = vrot.slane %v822, %v826
      %v828 = vlaneseq
      %v829 = vshrl.u32 %v828, 7
      %v830 = vsub.s32 1, %v829
      %v831 = vrot.slane %v822, %v830
      %v834 = vmul.f32 %v819, %v827
      %v835 = vmul.f32 %v820, %v831
      %s836 = scalar_lea.vmem %s2, 40
      %v837 = vld [vmem:[%s836] sm:$0xff]
      %v839 = vsel %vm358, %v837, 0
      %v842 = vsel %vm362, %v834, 0
      %v845 = vsel %vm362, %v835, 0
      %847 = vmatprep.subr.mxu0 0.0
      %848 = vmatpush1.msra.mxu0 0.0
      %849 = vmatprep.subr.mxu0 0.0
      %850 = vmatpush1.msra.mxu0 0.0
      %851 = vmatprep.subr.mxu0 0.0
      %852 = vmatpush1.msra.mxu0 0.0
      %853 = vmatprep.subr.mxu0 0.0
      %854 = vmatpush1.msra.mxu0 0.0
      %855 = vmatprep.subr.mxu0 0.0
      %856 = vmatpush1.msra.mxu0 0.0
      %857 = vmatprep.subr.mxu0 0.0
      %858 = vmatpush1.msra.mxu0 0.0
      %859 = vmatprep.subr.mxu0 0.0
      %860 = vmatpush1.msra.mxu0 0.0
      %861 = vmatprep.subr.mxu0 0.0
      %862 = vmatpush1.msra.mxu0 0.0
      %863 = vmatprep.subr.mxu0 0.0
      %864 = vmatpush1.msra.mxu0 0.0
      %865 = vmatprep.subr.mxu0 0.0
      %866 = vmatpush1.msra.mxu0 0.0
      %867 = vmatprep.subr.mxu0 0.0
      %868 = vmatpush1.msra.mxu0 0.0
      %869 = vmatprep.subr.mxu0 0.0
      %870 = vmatpush1.msra.mxu0 0.0
      %871 = vmatprep.subr.mxu0 0.0
      %872 = vmatpush1.msra.mxu0 0.0
      %873 = vmatprep.subr.mxu0 0.0
      %874 = vmatpush1.msra.mxu0 0.0
      %875 = vmatprep.subr.mxu0 0.0
      %876 = vmatpush1.msra.mxu0 0.0
      %877 = vmatprep.subr.mxu0 %v845
      %878 = vmatpush1.msra.mxu0 %v842
      %879 = vmatprep.subr.mxu0 0.0
      %880 = vmatpush2.msra.mxu0 0.0
      %881 = vmatprep.subr.mxu0 0.0
      %882 = vmatpush2.msra.mxu0 0.0
      %883 = vmatprep.subr.mxu0 0.0
      %884 = vmatpush2.msra.mxu0 0.0
      %885 = vmatprep.subr.mxu0 0.0
      %886 = vmatpush2.msra.mxu0 0.0
      %887 = vmatprep.subr.mxu0 0.0
      %888 = vmatpush2.msra.mxu0 0.0
      %889 = vmatprep.subr.mxu0 0.0
      %890 = vmatpush2.msra.mxu0 0.0
      %891 = vmatprep.subr.mxu0 0.0
      %892 = vmatpush2.msra.mxu0 0.0
      %893 = vmatprep.subr.mxu0 0.0
      %894 = vmatpush2.msra.mxu0 0.0
      %895 = vmatprep.subr.mxu0 0.0
      %896 = vmatpush2.msra.mxu0 0.0
      %897 = vmatprep.subr.mxu0 0.0
      %898 = vmatpush2.msra.mxu0 0.0
      %899 = vmatprep.subr.mxu0 0.0
      %900 = vmatpush2.msra.mxu0 0.0
      %901 = vmatprep.subr.mxu0 0.0
      %902 = vmatpush2.msra.mxu0 0.0
      %903 = vmatprep.subr.mxu0 0.0
      %904 = vmatpush2.msra.mxu0 0.0
      %905 = vmatprep.subr.mxu0 0.0
      %906 = vmatpush2.msra.mxu0 0.0
      %907 = vmatprep.subr.mxu0 0.0
      %908 = vmatpush2.msra.mxu0 0.0
      %909 = vmatprep.subr.mxu0 0.0
      %910 = vmatpush2.msra.mxu0 0.0
      %911 = vmatprep.mubr.f32.mxu0 0.0
      %912 = vmatmul.mubr.f32.gmra.mxu0 %v839
      %v913 = vpop.f32.mrf.mxu0
      %v914 = vadd.f32 0.0, %v913
      %v915 = vpop.f32.mrf.mxu0
      %v916 = vadd.f32 0.0, %v915
      %917 = vdwg.mxu0
      %v918 = vadd.f32 %v812, %v914
      %v919 = vadd.f32 %v813, %v916
      %920 = vrot.lane.b32.xlu0 %v306, 113
      %v921 = vpop.permute.xlu0 %920
      %922 = vrot.lane.b32.xlu0 %v308, 113
      %v923 = vpop.permute.xlu0 %922
      %vm924 = vcmp.lt.s32.totalorder %v315, 113
      %v925 = vsel %vm924, %v921, %v923
      %v926 = vsel %vm924, %v923, %v921
      %s927 = scalar_lea.vmem %s1, 12
      %v928 = vld [vmem:[%s927] sm:$0x3]
      %v930 = vlaneseq
      %v931 = vshrl.u32 %v930, 7
      %v932 = vsub.s32 0, %v931
      %v933 = vrot.slane %v928, %v932
      %v934 = vlaneseq
      %v935 = vshrl.u32 %v934, 7
      %v936 = vsub.s32 1, %v935
      %v937 = vrot.slane %v928, %v936
      %v940 = vmul.f32 %v925, %v933
      %v941 = vmul.f32 %v926, %v937
      %s942 = scalar_lea.vmem %s2, 48
      %v943 = vld [vmem:[%s942] sm:$0xff]
      %v945 = vsel %vm358, %v943, 0
      %v948 = vsel %vm362, %v940, 0
      %v951 = vsel %vm362, %v941, 0
      %953 = vmatprep.subr.mxu0 0.0
      %954 = vmatpush1.msra.mxu0 0.0
      %955 = vmatprep.subr.mxu0 0.0
      %956 = vmatpush1.msra.mxu0 0.0
      %957 = vmatprep.subr.mxu0 0.0
      %958 = vmatpush1.msra.mxu0 0.0
      %959 = vmatprep.subr.mxu0 0.0
      %960 = vmatpush1.msra.mxu0 0.0
      %961 = vmatprep.subr.mxu0 0.0
      %962 = vmatpush1.msra.mxu0 0.0
      %963 = vmatprep.subr.mxu0 0.0
      %964 = vmatpush1.msra.mxu0 0.0
      %965 = vmatprep.subr.mxu0 0.0
      %966 = vmatpush1.msra.mxu0 0.0
      %967 = vmatprep.subr.mxu0 0.0
      %968 = vmatpush1.msra.mxu0 0.0
      %969 = vmatprep.subr.mxu0 0.0
      %970 = vmatpush1.msra.mxu0 0.0
      %971 = vmatprep.subr.mxu0 0.0
      %972 = vmatpush1.msra.mxu0 0.0
      %973 = vmatprep.subr.mxu0 0.0
      %974 = vmatpush1.msra.mxu0 0.0
      %975 = vmatprep.subr.mxu0 0.0
      %976 = vmatpush1.msra.mxu0 0.0
      %977 = vmatprep.subr.mxu0 0.0
      %978 = vmatpush1.msra.mxu0 0.0
      %979 = vmatprep.subr.mxu0 0.0
      %980 = vmatpush1.msra.mxu0 0.0
      %981 = vmatprep.subr.mxu0 0.0
      %982 = vmatpush1.msra.mxu0 0.0
      %983 = vmatprep.subr.mxu0 %v951
      %984 = vmatpush1.msra.mxu0 %v948
      %985 = vmatprep.subr.mxu0 0.0
      %986 = vmatpush2.msra.mxu0 0.0
      %987 = vmatprep.subr.mxu0 0.0
      %988 = vmatpush2.msra.mxu0 0.0
      %989 = vmatprep.subr.mxu0 0.0
      %990 = vmatpush2.msra.mxu0 0.0
      %991 = vmatprep.subr.mxu0 0.0
      %992 = vmatpush2.msra.mxu0 0.0
      %993 = vmatprep.subr.mxu0 0.0
      %994 = vmatpush2.msra.mxu0 0.0
      %995 = vmatprep.subr.mxu0 0.0
      %996 = vmatpush2.msra.mxu0 0.0
      %997 = vmatprep.subr.mxu0 0.0
      %998 = vmatpush2.msra.mxu0 0.0
      %999 = vmatprep.subr.mxu0 0.0
      %1000 = vmatpush2.msra.mxu0 0.0
      %1001 = vmatprep.subr.mxu0 0.0
      %1002 = vmatpush2.msra.mxu0 0.0
      %1003 = vmatprep.subr.mxu0 0.0
      %1004 = vmatpush2.msra.mxu0 0.0
      %1005 = vmatprep.subr.mxu0 0.0
      %1006 = vmatpush2.msra.mxu0 0.0
      %1007 = vmatprep.subr.mxu0 0.0
      %1008 = vmatpush2.msra.mxu0 0.0
      %1009 = vmatprep.subr.mxu0 0.0
      %1010 = vmatpush2.msra.mxu0 0.0
      %1011 = vmatprep.subr.mxu0 0.0
      %1012 = vmatpush2.msra.mxu0 0.0
      %1013 = vmatprep.subr.mxu0 0.0
      %1014 = vmatpush2.msra.mxu0 0.0
      %1015 = vmatprep.subr.mxu0 0.0
      %1016 = vmatpush2.msra.mxu0 0.0
      %1017 = vmatprep.mubr.f32.mxu0 0.0
      %1018 = vmatmul.mubr.f32.gmra.mxu0 %v945
      %v1019 = vpop.f32.mrf.mxu0
      %v1020 = vadd.f32 0.0, %v1019
      %v1021 = vpop.f32.mrf.mxu0
      %v1022 = vadd.f32 0.0, %v1021
      %1023 = vdwg.mxu0
      %v1024 = vadd.f32 %v918, %v1020
      %v1025 = vadd.f32 %v919, %v1022
      %1026 = vrot.lane.b32.xlu0 %v306, 112
      %v1027 = vpop.permute.xlu0 %1026
      %1028 = vrot.lane.b32.xlu0 %v308, 112
      %v1029 = vpop.permute.xlu0 %1028
      %vm1030 = vcmp.lt.s32.totalorder %v315, 112
      %v1031 = vsel %vm1030, %v1027, %v1029
      %v1032 = vsel %vm1030, %v1029, %v1027
      %s1033 = scalar_lea.vmem %s1, 14
      %v1034 = vld [vmem:[%s1033] sm:$0x3]
      %v1036 = vlaneseq
      %v1037 = vshrl.u32 %v1036, 7
      %v1038 = vsub.s32 0, %v1037
      %v1039 = vrot.slane %v1034, %v1038
      %v1040 = vlaneseq
      %v1041 = vshrl.u32 %v1040, 7
      %v1042 = vsub.s32 1, %v1041
      %v1043 = vrot.slane %v1034, %v1042
      %v1046 = vmul.f32 %v1031, %v1039
      %v1047 = vmul.f32 %v1032, %v1043
      %s1048 = scalar_lea.vmem %s2, 56
      %v1049 = vld [vmem:[%s1048] sm:$0xff]
      %v1051 = vsel %vm358, %v1049, 0
      %v1054 = vsel %vm362, %v1046, 0
      %v1057 = vsel %vm362, %v1047, 0
      %1059 = vmatprep.subr.mxu0 0.0
      %1060 = vmatpush1.msra.mxu0 0.0
      %1061 = vmatprep.subr.mxu0 0.0
      %1062 = vmatpush1.msra.mxu0 0.0
      %1063 = vmatprep.subr.mxu0 0.0
      %1064 = vmatpush1.msra.mxu0 0.0
      %1065 = vmatprep.subr.mxu0 0.0
      %1066 = vmatpush1.msra.mxu0 0.0
      %1067 = vmatprep.subr.mxu0 0.0
      %1068 = vmatpush1.msra.mxu0 0.0
      %1069 = vmatprep.subr.mxu0 0.0
      %1070 = vmatpush1.msra.mxu0 0.0
      %1071 = vmatprep.subr.mxu0 0.0
      %1072 = vmatpush1.msra.mxu0 0.0
      %1073 = vmatprep.subr.mxu0 0.0
      %1074 = vmatpush1.msra.mxu0 0.0
      %1075 = vmatprep.subr.mxu0 0.0
      %1076 = vmatpush1.msra.mxu0 0.0
      %1077 = vmatprep.subr.mxu0 0.0
      %1078 = vmatpush1.msra.mxu0 0.0
      %1079 = vmatprep.subr.mxu0 0.0
      %1080 = vmatpush1.msra.mxu0 0.0
      %1081 = vmatprep.subr.mxu0 0.0
      %1082 = vmatpush1.msra.mxu0 0.0
      %1083 = vmatprep.subr.mxu0 0.0
      %1084 = vmatpush1.msra.mxu0 0.0
      %1085 = vmatprep.subr.mxu0 0.0
      %1086 = vmatpush1.msra.mxu0 0.0
      %1087 = vmatprep.subr.mxu0 0.0
      %1088 = vmatpush1.msra.mxu0 0.0
      %1089 = vmatprep.subr.mxu0 %v1057
      %1090 = vmatpush1.msra.mxu0 %v1054
      %1091 = vmatprep.subr.mxu0 0.0
      %1092 = vmatpush2.msra.mxu0 0.0
      %1093 = vmatprep.subr.mxu0 0.0
      %1094 = vmatpush2.msra.mxu0 0.0
      %1095 = vmatprep.subr.mxu0 0.0
      %1096 = vmatpush2.msra.mxu0 0.0
      %1097 = vmatprep.subr.mxu0 0.0
      %1098 = vmatpush2.msra.mxu0 0.0
      %1099 = vmatprep.subr.mxu0 0.0
      %1100 = vmatpush2.msra.mxu0 0.0
      %1101 = vmatprep.subr.mxu0 0.0
      %1102 = vmatpush2.msra.mxu0 0.0
      %1103 = vmatprep.subr.mxu0 0.0
      %1104 = vmatpush2.msra.mxu0 0.0
      %1105 = vmatprep.subr.mxu0 0.0
      %1106 = vmatpush2.msra.mxu0 0.0
      %1107 = vmatprep.subr.mxu0 0.0
      %1108 = vmatpush2.msra.mxu0 0.0
      %1109 = vmatprep.subr.mxu0 0.0
      %1110 = vmatpush2.msra.mxu0 0.0
      %1111 = vmatprep.subr.mxu0 0.0
      %1112 = vmatpush2.msra.mxu0 0.0
      %1113 = vmatprep.subr.mxu0 0.0
      %1114 = vmatpush2.msra.mxu0 0.0
      %1115 = vmatprep.subr.mxu0 0.0
      %1116 = vmatpush2.msra.mxu0 0.0
      %1117 = vmatprep.subr.mxu0 0.0
      %1118 = vmatpush2.msra.mxu0 0.0
      %1119 = vmatprep.subr.mxu0 0.0
      %1120 = vmatpush2.msra.mxu0 0.0
      %1121 = vmatprep.subr.mxu0 0.0
      %1122 = vmatpush2.msra.mxu0 0.0
      %1123 = vmatprep.mubr.f32.mxu0 0.0
      %1124 = vmatmul.mubr.f32.gmra.mxu0 %v1051
      %v1125 = vpop.f32.mrf.mxu0
      %v1126 = vadd.f32 0.0, %v1125
      %v1127 = vpop.f32.mrf.mxu0
      %v1128 = vadd.f32 0.0, %v1127
      %1129 = vdwg.mxu0
      %v1130 = vadd.f32 %v1024, %v1126
      %v1131 = vadd.f32 %v1025, %v1128
      %1132 = vrot.lane.b32.xlu0 %v306, 111
      %v1133 = vpop.permute.xlu0 %1132
      %1134 = vrot.lane.b32.xlu0 %v308, 111
      %v1135 = vpop.permute.xlu0 %1134
      %vm1136 = vcmp.lt.s32.totalorder %v315, 111
      %v1137 = vsel %vm1136, %v1133, %v1135
      %v1138 = vsel %vm1136, %v1135, %v1133
      %s1139 = scalar_lea.vmem %s1, 16
      %v1140 = vld [vmem:[%s1139] sm:$0x3]
      %v1142 = vlaneseq
      %v1143 = vshrl.u32 %v1142, 7
      %v1144 = vsub.s32 0, %v1143
      %v1145 = vrot.slane %v1140, %v1144
      %v1146 = vlaneseq
      %v1147 = vshrl.u32 %v1146, 7
      %v1148 = vsub.s32 1, %v1147
      %v1149 = vrot.slane %v1140, %v1148
      %v1152 = vmul.f32 %v1137, %v1145
      %v1153 = vmul.f32 %v1138, %v1149
      %s1154 = scalar_lea.vmem %s2, 64
      %v1155 = vld [vmem:[%s1154] sm:$0xff]
      %v1157 = vsel %vm358, %v1155, 0
      %v1160 = vsel %vm362, %v1152, 0
      %v1163 = vsel %vm362, %v1153, 0
      %1165 = vmatprep.subr.mxu0 0.0
      %1166 = vmatpush1.msra.mxu0 0.0
      %1167 = vmatprep.subr.mxu0 0.0
      %1168 = vmatpush1.msra.mxu0 0.0
      %1169 = vmatprep.subr.mxu0 0.0
      %1170 = vmatpush1.msra.mxu0 0.0
      %1171 = vmatprep.subr.mxu0 0.0
      %1172 = vmatpush1.msra.mxu0 0.0
      %1173 = vmatprep.subr.mxu0 0.0
      %1174 = vmatpush1.msra.mxu0 0.0
      %1175 = vmatprep.subr.mxu0 0.0
      %1176 = vmatpush1.msra.mxu0 0.0
      %1177 = vmatprep.subr.mxu0 0.0
      %1178 = vmatpush1.msra.mxu0 0.0
      %1179 = vmatprep.subr.mxu0 0.0
      %1180 = vmatpush1.msra.mxu0 0.0
      %1181 = vmatprep.subr.mxu0 0.0
      %1182 = vmatpush1.msra.mxu0 0.0
      %1183 = vmatprep.subr.mxu0 0.0
      %1184 = vmatpush1.msra.mxu0 0.0
      %1185 = vmatprep.subr.mxu0 0.0
      %1186 = vmatpush1.msra.mxu0 0.0
      %1187 = vmatprep.subr.mxu0 0.0
      %1188 = vmatpush1.msra.mxu0 0.0
      %1189 = vmatprep.subr.mxu0 0.0
      %1190 = vmatpush1.msra.mxu0 0.0
      %1191 = vmatprep.subr.mxu0 0.0
      %1192 = vmatpush1.msra.mxu0 0.0
      %1193 = vmatprep.subr.mxu0 0.0
      %1194 = vmatpush1.msra.mxu0 0.0
      %1195 = vmatprep.subr.mxu0 %v1163
      %1196 = vmatpush1.msra.mxu0 %v1160
      %1197 = vmatprep.subr.mxu0 0.0
      %1198 = vmatpush2.msra.mxu0 0.0
      %1199 = vmatprep.subr.mxu0 0.0
      %1200 = vmatpush2.msra.mxu0 0.0
      %1201 = vmatprep.subr.mxu0 0.0
      %1202 = vmatpush2.msra.mxu0 0.0
      %1203 = vmatprep.subr.mxu0 0.0
      %1204 = vmatpush2.msra.mxu0 0.0
      %1205 = vmatprep.subr.mxu0 0.0
      %1206 = vmatpush2.msra.mxu0 0.0
      %1207 = vmatprep.subr.mxu0 0.0
      %1208 = vmatpush2.msra.mxu0 0.0
      %1209 = vmatprep.subr.mxu0 0.0
      %1210 = vmatpush2.msra.mxu0 0.0
      %1211 = vmatprep.subr.mxu0 0.0
      %1212 = vmatpush2.msra.mxu0 0.0
      %1213 = vmatprep.subr.mxu0 0.0
      %1214 = vmatpush2.msra.mxu0 0.0
      %1215 = vmatprep.subr.mxu0 0.0
      %1216 = vmatpush2.msra.mxu0 0.0
      %1217 = vmatprep.subr.mxu0 0.0
      %1218 = vmatpush2.msra.mxu0 0.0
      %1219 = vmatprep.subr.mxu0 0.0
      %1220 = vmatpush2.msra.mxu0 0.0
      %1221 = vmatprep.subr.mxu0 0.0
      %1222 = vmatpush2.msra.mxu0 0.0
      %1223 = vmatprep.subr.mxu0 0.0
      %1224 = vmatpush2.msra.mxu0 0.0
      %1225 = vmatprep.subr.mxu0 0.0
      %1226 = vmatpush2.msra.mxu0 0.0
      %1227 = vmatprep.subr.mxu0 0.0
      %1228 = vmatpush2.msra.mxu0 0.0
      %1229 = vmatprep.mubr.f32.mxu0 0.0
      %1230 = vmatmul.mubr.f32.gmra.mxu0 %v1157
      %v1231 = vpop.f32.mrf.mxu0
      %v1232 = vadd.f32 0.0, %v1231
      %v1233 = vpop.f32.mrf.mxu0
      %v1234 = vadd.f32 0.0, %v1233
      %1235 = vdwg.mxu0
      %v1236 = vadd.f32 %v1130, %v1232
      %v1237 = vadd.f32 %v1131, %v1234
      %v1238 = vld [vmem:[%s3] sm:$0xff]
      %1240 = vset.pattern.permute.xlu0 0
      %1241 = vperm.xlu0 %1240, %v1238
      %v1242 = vpop.permute.xlu0 %1241
      %v1244 = vadd.f32 %v1236, %v1242
      %v1245 = vadd.f32 %v1237, %v1242
      %v1246 = vmax.f32 %v1244, 0.0
      %v1247 = vmax.f32 %v1245, 0.0
      %v1248 = vld [vmem:[%s6] sm:$0xff]
      %v1249 = vld [vmem:[%s7] sm:$0xff]
      %1251 = vset.pattern.permute.xlu0 0
      %1252 = vperm.xlu0 %1251, %v1249
      %v1253 = vpop.permute.xlu0 %1252
      %v1256 = vsel %vm358, %v1248, 0
      %1258 = vmatprep.subr.mxu0 0.0
      %1259 = vmatpush1.msra.mxu0 0.0
      %1260 = vmatprep.subr.mxu0 0.0
      %1261 = vmatpush1.msra.mxu0 0.0
      %1262 = vmatprep.subr.mxu0 0.0
      %1263 = vmatpush1.msra.mxu0 0.0
      %1264 = vmatprep.subr.mxu0 0.0
      %1265 = vmatpush1.msra.mxu0 0.0
      %1266 = vmatprep.subr.mxu0 0.0
      %1267 = vmatpush1.msra.mxu0 0.0
      %1268 = vmatprep.subr.mxu0 0.0
      %1269 = vmatpush1.msra.mxu0 0.0
      %1270 = vmatprep.subr.mxu0 0.0
      %1271 = vmatpush1.msra.mxu0 0.0
      %1272 = vmatprep.subr.mxu0 0.0
      %1273 = vmatpush1.msra.mxu0 0.0
      %1274 = vmatprep.subr.mxu0 0.0
      %1275 = vmatpush1.msra.mxu0 0.0
      %1276 = vmatprep.subr.mxu0 0.0
      %1277 = vmatpush1.msra.mxu0 0.0
      %1278 = vmatprep.subr.mxu0 0.0
      %1279 = vmatpush1.msra.mxu0 0.0
      %1280 = vmatprep.subr.mxu0 0.0
      %1281 = vmatpush1.msra.mxu0 0.0
      %1282 = vmatprep.subr.mxu0 0.0
      %1283 = vmatpush1.msra.mxu0 0.0
      %1284 = vmatprep.subr.mxu0 0.0
      %1285 = vmatpush1.msra.mxu0 0.0
      %1286 = vmatprep.subr.mxu0 0.0
      %1287 = vmatpush1.msra.mxu0 0.0
      %1288 = vmatprep.subr.mxu0 %v739
      %1289 = vmatpush1.msra.mxu0 %v737
      %1290 = vmatprep.subr.mxu0 0.0
      %1291 = vmatpush2.msra.mxu0 0.0
      %1292 = vmatprep.subr.mxu0 0.0
      %1293 = vmatpush2.msra.mxu0 0.0
      %1294 = vmatprep.subr.mxu0 0.0
      %1295 = vmatpush2.msra.mxu0 0.0
      %1296 = vmatprep.subr.mxu0 0.0
      %1297 = vmatpush2.msra.mxu0 0.0
      %1298 = vmatprep.subr.mxu0 0.0
      %1299 = vmatpush2.msra.mxu0 0.0
      %1300 = vmatprep.subr.mxu0 0.0
      %1301 = vmatpush2.msra.mxu0 0.0
      %1302 = vmatprep.subr.mxu0 0.0
      %1303 = vmatpush2.msra.mxu0 0.0
      %1304 = vmatprep.subr.mxu0 0.0
      %1305 = vmatpush2.msra.mxu0 0.0
      %1306 = vmatprep.subr.mxu0 0.0
      %1307 = vmatpush2.msra.mxu0 0.0
      %1308 = vmatprep.subr.mxu0 0.0
      %1309 = vmatpush2.msra.mxu0 0.0
      %1310 = vmatprep.subr.mxu0 0.0
      %1311 = vmatpush2.msra.mxu0 0.0
      %1312 = vmatprep.subr.mxu0 0.0
      %1313 = vmatpush2.msra.mxu0 0.0
      %1314 = vmatprep.subr.mxu0 0.0
      %1315 = vmatpush2.msra.mxu0 0.0
      %1316 = vmatprep.subr.mxu0 0.0
      %1317 = vmatpush2.msra.mxu0 0.0
      %1318 = vmatprep.subr.mxu0 0.0
      %1319 = vmatpush2.msra.mxu0 0.0
      %1320 = vmatprep.subr.mxu0 0.0
      %1321 = vmatpush2.msra.mxu0 0.0
      %1322 = vmatprep.mubr.f32.mxu0 0.0
      %1323 = vmatmul.mubr.f32.gmra.mxu0 %v1256
      %v1324 = vpop.f32.mrf.mxu0
      %v1325 = vadd.f32 %v1253, %v1324
      %v1326 = vpop.f32.mrf.mxu0
      %v1327 = vadd.f32 %v1253, %v1326
      %1328 = vdwg.mxu0
      %1329 = vrot.lane.b32.xlu0 %v1246, 17
      %v1330 = vpop.permute.xlu0 %1329
      %1331 = vrot.lane.b32.xlu0 %v1247, 17
      %v1332 = vpop.permute.xlu0 %1331
      %v1333 = vsel %vm316, %v1330, %v1332
      %v1334 = vsel %vm316, %v1332, %v1330
      %v1335 = vmul.f32 %v1334, %v324
      %v1336 = vmul.f32 %v1333, %v328
      %v1337 = vld [vmem:[%s4] sm:$0xff]
      %1338 = vrot.lane.b32.xlu0 %v1246, 16
      %v1339 = vpop.permute.xlu0 %1338
      %1340 = vrot.lane.b32.xlu0 %v1247, 16
      %v1341 = vpop.permute.xlu0 %1340
      %v1342 = vsel %vm338, %v1339, %v1341
      %v1343 = vsel %vm338, %v1341, %v1339
      %v1344 = vmul.f32 %v1343, %v347
      %v1345 = vmul.f32 %v1342, %v351
      %s1346 = scalar_lea.vmem %s4, 8
      %v1347 = vld [vmem:[%s1346] sm:$0xff]
      %vm1348 = vcmask 64512
      %v1350 = vsel %vm1348, %v1347, 0
      %1352 = vmatprep.subr.mxu0 0.0
      %1353 = vmatpush1.msra.mxu0 0.0
      %1354 = vmatprep.subr.mxu0 0.0
      %1355 = vmatpush1.msra.mxu0 0.0
      %1356 = vmatprep.subr.mxu0 0.0
      %1357 = vmatpush1.msra.mxu0 0.0
      %1358 = vmatprep.subr.mxu0 0.0
      %1359 = vmatpush1.msra.mxu0 0.0
      %1360 = vmatprep.subr.mxu0 0.0
      %1361 = vmatpush1.msra.mxu0 0.0
      %1362 = vmatprep.subr.mxu0 0.0
      %1363 = vmatpush1.msra.mxu0 0.0
      %1364 = vmatprep.subr.mxu0 0.0
      %1365 = vmatpush1.msra.mxu0 0.0
      %1366 = vmatprep.subr.mxu0 0.0
      %1367 = vmatpush1.msra.mxu0 0.0
      %1368 = vmatprep.subr.mxu0 0.0
      %1369 = vmatpush1.msra.mxu0 0.0
      %1370 = vmatprep.subr.mxu0 0.0
      %1371 = vmatpush1.msra.mxu0 0.0
      %1372 = vmatprep.subr.mxu0 0.0
      %1373 = vmatpush1.msra.mxu0 0.0
      %1374 = vmatprep.subr.mxu0 0.0
      %1375 = vmatpush1.msra.mxu0 0.0
      %1376 = vmatprep.subr.mxu0 0.0
      %1377 = vmatpush1.msra.mxu0 0.0
      %1378 = vmatprep.subr.mxu0 0.0
      %1379 = vmatpush1.msra.mxu0 0.0
      %1380 = vmatprep.subr.mxu0 0.0
      %1381 = vmatpush1.msra.mxu0 0.0
      %1382 = vmatprep.subr.mxu0 %v1345
      %1383 = vmatpush1.msra.mxu0 %v1344
      %1384 = vmatprep.subr.mxu0 0.0
      %1385 = vmatpush2.msra.mxu0 0.0
      %1386 = vmatprep.subr.mxu0 0.0
      %1387 = vmatpush2.msra.mxu0 0.0
      %1388 = vmatprep.subr.mxu0 0.0
      %1389 = vmatpush2.msra.mxu0 0.0
      %1390 = vmatprep.subr.mxu0 0.0
      %1391 = vmatpush2.msra.mxu0 0.0
      %1392 = vmatprep.subr.mxu0 0.0
      %1393 = vmatpush2.msra.mxu0 0.0
      %1394 = vmatprep.subr.mxu0 0.0
      %1395 = vmatpush2.msra.mxu0 0.0
      %1396 = vmatprep.subr.mxu0 0.0
      %1397 = vmatpush2.msra.mxu0 0.0
      %1398 = vmatprep.subr.mxu0 0.0
      %1399 = vmatpush2.msra.mxu0 0.0
      %1400 = vmatprep.subr.mxu0 0.0
      %1401 = vmatpush2.msra.mxu0 0.0
      %1402 = vmatprep.subr.mxu0 0.0
      %1403 = vmatpush2.msra.mxu0 0.0
      %1404 = vmatprep.subr.mxu0 0.0
      %1405 = vmatpush2.msra.mxu0 0.0
      %1406 = vmatprep.subr.mxu0 0.0
      %1407 = vmatpush2.msra.mxu0 0.0
      %1408 = vmatprep.subr.mxu0 0.0
      %1409 = vmatpush2.msra.mxu0 0.0
      %1410 = vmatprep.subr.mxu0 0.0
      %1411 = vmatpush2.msra.mxu0 0.0
      %1412 = vmatprep.subr.mxu0 0.0
      %1413 = vmatpush2.msra.mxu0 0.0
      %1414 = vmatprep.subr.mxu0 0.0
      %1415 = vmatpush2.msra.mxu0 0.0
      %1416 = vmatprep.mubr.f32.mxu0 0.0
      %1417 = vmatmul.mubr.f32.gmra.mxu0 %v1350
      %v1418 = vpop.f32.mrf.mxu0
      %v1419 = vadd.f32 0.0, %v1418
      %v1420 = vpop.f32.mrf.mxu0
      %v1421 = vadd.f32 0.0, %v1420
      %1422 = vdwg.mxu0
      %v1424 = vsel %vm1348, %v1337, 0
      %1426 = vmatprep.subr.mxu0 0.0
      %1427 = vmatpush1.msra.mxu0 0.0
      %1428 = vmatprep.subr.mxu0 0.0
      %1429 = vmatpush1.msra.mxu0 0.0
      %1430 = vmatprep.subr.mxu0 0.0
      %1431 = vmatpush1.msra.mxu0 0.0
      %1432 = vmatprep.subr.mxu0 0.0
      %1433 = vmatpush1.msra.mxu0 0.0
      %1434 = vmatprep.subr.mxu0 0.0
      %1435 = vmatpush1.msra.mxu0 0.0
      %1436 = vmatprep.subr.mxu0 0.0
      %1437 = vmatpush1.msra.mxu0 0.0
      %1438 = vmatprep.subr.mxu0 0.0
      %1439 = vmatpush1.msra.mxu0 0.0
      %1440 = vmatprep.subr.mxu0 0.0
      %1441 = vmatpush1.msra.mxu0 0.0
      %1442 = vmatprep.subr.mxu0 0.0
      %1443 = vmatpush1.msra.mxu0 0.0
      %1444 = vmatprep.subr.mxu0 0.0
      %1445 = vmatpush1.msra.mxu0 0.0
      %1446 = vmatprep.subr.mxu0 0.0
      %1447 = vmatpush1.msra.mxu0 0.0
      %1448 = vmatprep.subr.mxu0 0.0
      %1449 = vmatpush1.msra.mxu0 0.0
      %1450 = vmatprep.subr.mxu0 0.0
      %1451 = vmatpush1.msra.mxu0 0.0
      %1452 = vmatprep.subr.mxu0 0.0
      %1453 = vmatpush1.msra.mxu0 0.0
      %1454 = vmatprep.subr.mxu0 0.0
      %1455 = vmatpush1.msra.mxu0 0.0
      %1456 = vmatprep.subr.mxu0 %v1336
      %1457 = vmatpush1.msra.mxu0 %v1335
      %1458 = vmatprep.subr.mxu0 0.0
      %1459 = vmatpush2.msra.mxu0 0.0
      %1460 = vmatprep.subr.mxu0 0.0
      %1461 = vmatpush2.msra.mxu0 0.0
      %1462 = vmatprep.subr.mxu0 0.0
      %1463 = vmatpush2.msra.mxu0 0.0
      %1464 = vmatprep.subr.mxu0 0.0
      %1465 = vmatpush2.msra.mxu0 0.0
      %1466 = vmatprep.subr.mxu0 0.0
      %1467 = vmatpush2.msra.mxu0 0.0
      %1468 = vmatprep.subr.mxu0 0.0
      %1469 = vmatpush2.msra.mxu0 0.0
      %1470 = vmatprep.subr.mxu0 0.0
      %1471 = vmatpush2.msra.mxu0 0.0
      %1472 = vmatprep.subr.mxu0 0.0
      %1473 = vmatpush2.msra.mxu0 0.0
      %1474 = vmatprep.subr.mxu0 0.0
      %1475 = vmatpush2.msra.mxu0 0.0
      %1476 = vmatprep.subr.mxu0 0.0
      %1477 = vmatpush2.msra.mxu0 0.0
      %1478 = vmatprep.subr.mxu0 0.0
      %1479 = vmatpush2.msra.mxu0 0.0
      %1480 = vmatprep.subr.mxu0 0.0
      %1481 = vmatpush2.msra.mxu0 0.0
      %1482 = vmatprep.subr.mxu0 0.0
      %1483 = vmatpush2.msra.mxu0 0.0
      %1484 = vmatprep.subr.mxu0 0.0
      %1485 = vmatpush2.msra.mxu0 0.0
      %1486 = vmatprep.subr.mxu0 0.0
      %1487 = vmatpush2.msra.mxu0 0.0
      %1488 = vmatprep.subr.mxu0 0.0
      %1489 = vmatpush2.msra.mxu0 0.0
      %1490 = vmatprep.mubr.f32.mxu0 0.0
      %1491 = vmatmul.mubr.f32.gmra.mxu0 %v1424
      %v1492 = vpop.f32.mrf.mxu0
      %v1493 = vadd.f32 %v1419, %v1492
      %v1494 = vpop.f32.mrf.mxu0
      %v1495 = vadd.f32 %v1421, %v1494
      %1496 = vdwg.mxu0
      %1497 = vrot.lane.b32.xlu0 %v1246, 15
      %v1498 = vpop.permute.xlu0 %1497
      %1499 = vrot.lane.b32.xlu0 %v1247, 15
      %v1500 = vpop.permute.xlu0 %1499
      %v1501 = vsel %vm524, %v1498, %v1500
      %v1502 = vsel %vm524, %v1500, %v1498
      %v1503 = vmul.f32 %v1502, %v533
      %v1504 = vmul.f32 %v1501, %v537
      %s1505 = scalar_lea.vmem %s4, 16
      %v1506 = vld [vmem:[%s1505] sm:$0xff]
      %v1508 = vsel %vm1348, %v1506, 0
      %1510 = vmatprep.subr.mxu0 0.0
      %1511 = vmatpush1.msra.mxu0 0.0
      %1512 = vmatprep.subr.mxu0 0.0
      %1513 = vmatpush1.msra.mxu0 0.0
      %1514 = vmatprep.subr.mxu0 0.0
      %1515 = vmatpush1.msra.mxu0 0.0
      %1516 = vmatprep.subr.mxu0 0.0
      %1517 = vmatpush1.msra.mxu0 0.0
      %1518 = vmatprep.subr.mxu0 0.0
      %1519 = vmatpush1.msra.mxu0 0.0
      %1520 = vmatprep.subr.mxu0 0.0
      %1521 = vmatpush1.msra.mxu0 0.0
      %1522 = vmatprep.subr.mxu0 0.0
      %1523 = vmatpush1.msra.mxu0 0.0
      %1524 = vmatprep.subr.mxu0 0.0
      %1525 = vmatpush1.msra.mxu0 0.0
      %1526 = vmatprep.subr.mxu0 0.0
      %1527 = vmatpush1.msra.mxu0 0.0
      %1528 = vmatprep.subr.mxu0 0.0
      %1529 = vmatpush1.msra.mxu0 0.0
      %1530 = vmatprep.subr.mxu0 0.0
      %1531 = vmatpush1.msra.mxu0 0.0
      %1532 = vmatprep.subr.mxu0 0.0
      %1533 = vmatpush1.msra.mxu0 0.0
      %1534 = vmatprep.subr.mxu0 0.0
      %1535 = vmatpush1.msra.mxu0 0.0
      %1536 = vmatprep.subr.mxu0 0.0
      %1537 = vmatpush1.msra.mxu0 0.0
      %1538 = vmatprep.subr.mxu0 0.0
      %1539 = vmatpush1.msra.mxu0 0.0
      %1540 = vmatprep.subr.mxu0 %v1504
      %1541 = vmatpush1.msra.mxu0 %v1503
      %1542 = vmatprep.subr.mxu0 0.0
      %1543 = vmatpush2.msra.mxu0 0.0
      %1544 = vmatprep.subr.mxu0 0.0
      %1545 = vmatpush2.msra.mxu0 0.0
      %1546 = vmatprep.subr.mxu0 0.0
      %1547 = vmatpush2.msra.mxu0 0.0
      %1548 = vmatprep.subr.mxu0 0.0
      %1549 = vmatpush2.msra.mxu0 0.0
      %1550 = vmatprep.subr.mxu0 0.0
      %1551 = vmatpush2.msra.mxu0 0.0
      %1552 = vmatprep.subr.mxu0 0.0
      %1553 = vmatpush2.msra.mxu0 0.0
      %1554 = vmatprep.subr.mxu0 0.0
      %1555 = vmatpush2.msra.mxu0 0.0
      %1556 = vmatprep.subr.mxu0 0.0
      %1557 = vmatpush2.msra.mxu0 0.0
      %1558 = vmatprep.subr.mxu0 0.0
      %1559 = vmatpush2.msra.mxu0 0.0
      %1560 = vmatprep.subr.mxu0 0.0
      %1561 = vmatpush2.msra.mxu0 0.0
      %1562 = vmatprep.subr.mxu0 0.0
      %1563 = vmatpush2.msra.mxu0 0.0
      %1564 = vmatprep.subr.mxu0 0.0
      %1565 = vmatpush2.msra.mxu0 0.0
      %1566 = vmatprep.subr.mxu0 0.0
      %1567 = vmatpush2.msra.mxu0 0.0
      %1568 = vmatprep.subr.mxu0 0.0
      %1569 = vmatpush2.msra.mxu0 0.0
      %1570 = vmatprep.subr.mxu0 0.0
      %1571 = vmatpush2.msra.mxu0 0.0
      %1572 = vmatprep.subr.mxu0 0.0
      %1573 = vmatpush2.msra.mxu0 0.0
      %1574 = vmatprep.mubr.f32.mxu0 0.0
      %1575 = vmatmul.mubr.f32.gmra.mxu0 %v1508
      %v1576 = vpop.f32.mrf.mxu0
      %v1577 = vadd.f32 0.0, %v1576
      %v1578 = vpop.f32.mrf.mxu0
      %v1579 = vadd.f32 0.0, %v1578
      %1580 = vdwg.mxu0
      %v1581 = vadd.f32 %v1493, %v1577
      %v1582 = vadd.f32 %v1495, %v1579
      %1583 = vrot.lane.b32.xlu0 %v1246, 1
      %v1584 = vpop.permute.xlu0 %1583
      %1585 = vrot.lane.b32.xlu0 %v1247, 1
      %v1586 = vpop.permute.xlu0 %1585
      %v1587 = vsel %vm630, %v1584, %v1586
      %v1588 = vsel %vm630, %v1586, %v1584
      %v1589 = vmul.f32 %v1588, %v639
      %v1590 = vmul.f32 %v1587, %v643
      %s1591 = scalar_lea.vmem %s4, 24
      %v1592 = vld [vmem:[%s1591] sm:$0xff]
      %v1594 = vsel %vm1348, %v1592, 0
      %1596 = vmatprep.subr.mxu0 0.0
      %1597 = vmatpush1.msra.mxu0 0.0
      %1598 = vmatprep.subr.mxu0 0.0
      %1599 = vmatpush1.msra.mxu0 0.0
      %1600 = vmatprep.subr.mxu0 0.0
      %1601 = vmatpush1.msra.mxu0 0.0
      %1602 = vmatprep.subr.mxu0 0.0
      %1603 = vmatpush1.msra.mxu0 0.0
      %1604 = vmatprep.subr.mxu0 0.0
      %1605 = vmatpush1.msra.mxu0 0.0
      %1606 = vmatprep.subr.mxu0 0.0
      %1607 = vmatpush1.msra.mxu0 0.0
      %1608 = vmatprep.subr.mxu0 0.0
      %1609 = vmatpush1.msra.mxu0 0.0
      %1610 = vmatprep.subr.mxu0 0.0
      %1611 = vmatpush1.msra.mxu0 0.0
      %1612 = vmatprep.subr.mxu0 0.0
      %1613 = vmatpush1.msra.mxu0 0.0
      %1614 = vmatprep.subr.mxu0 0.0
      %1615 = vmatpush1.msra.mxu0 0.0
      %1616 = vmatprep.subr.mxu0 0.0
      %1617 = vmatpush1.msra.mxu0 0.0
      %1618 = vmatprep.subr.mxu0 0.0
      %1619 = vmatpush1.msra.mxu0 0.0
      %1620 = vmatprep.subr.mxu0 0.0
      %1621 = vmatpush1.msra.mxu0 0.0
      %1622 = vmatprep.subr.mxu0 0.0
      %1623 = vmatpush1.msra.mxu0 0.0
      %1624 = vmatprep.subr.mxu0 0.0
      %1625 = vmatpush1.msra.mxu0 0.0
      %1626 = vmatprep.subr.mxu0 %v1590
      %1627 = vmatpush1.msra.mxu0 %v1589
      %1628 = vmatprep.subr.mxu0 0.0
      %1629 = vmatpush2.msra.mxu0 0.0
      %1630 = vmatprep.subr.mxu0 0.0
      %1631 = vmatpush2.msra.mxu0 0.0
      %1632 = vmatprep.subr.mxu0 0.0
      %1633 = vmatpush2.msra.mxu0 0.0
      %1634 = vmatprep.subr.mxu0 0.0
      %1635 = vmatpush2.msra.mxu0 0.0
      %1636 = vmatprep.subr.mxu0 0.0
      %1637 = vmatpush2.msra.mxu0 0.0
      %1638 = vmatprep.subr.mxu0 0.0
      %1639 = vmatpush2.msra.mxu0 0.0
      %1640 = vmatprep.subr.mxu0 0.0
      %1641 = vmatpush2.msra.mxu0 0.0
      %1642 = vmatprep.subr.mxu0 0.0
      %1643 = vmatpush2.msra.mxu0 0.0
      %1644 = vmatprep.subr.mxu0 0.0
      %1645 = vmatpush2.msra.mxu0 0.0
      %1646 = vmatprep.subr.mxu0 0.0
      %1647 = vmatpush2.msra.mxu0 0.0
      %1648 = vmatprep.subr.mxu0 0.0
      %1649 = vmatpush2.msra.mxu0 0.0
      %1650 = vmatprep.subr.mxu0 0.0
      %1651 = vmatpush2.msra.mxu0 0.0
      %1652 = vmatprep.subr.mxu0 0.0
      %1653 = vmatpush2.msra.mxu0 0.0
      %1654 = vmatprep.subr.mxu0 0.0
      %1655 = vmatpush2.msra.mxu0 0.0
      %1656 = vmatprep.subr.mxu0 0.0
      %1657 = vmatpush2.msra.mxu0 0.0
      %1658 = vmatprep.subr.mxu0 0.0
      %1659 = vmatpush2.msra.mxu0 0.0
      %1660 = vmatprep.mubr.f32.mxu0 0.0
      %1661 = vmatmul.mubr.f32.gmra.mxu0 %v1594
      %v1662 = vpop.f32.mrf.mxu0
      %v1663 = vadd.f32 0.0, %v1662
      %v1664 = vpop.f32.mrf.mxu0
      %v1665 = vadd.f32 0.0, %v1664
      %1666 = vdwg.mxu0
      %v1667 = vadd.f32 %v1581, %v1663
      %v1668 = vadd.f32 %v1582, %v1665
      %s1669 = scalar_lea.vmem %s4, 32
      %v1670 = vld [vmem:[%s1669] sm:$0xff]
      %v1672 = vsel %vm1348, %v1670, 0
      %1674 = vmatprep.subr.mxu0 0.0
      %1675 = vmatpush1.msra.mxu0 0.0
      %1676 = vmatprep.subr.mxu0 0.0
      %1677 = vmatpush1.msra.mxu0 0.0
      %1678 = vmatprep.subr.mxu0 0.0
      %1679 = vmatpush1.msra.mxu0 0.0
      %1680 = vmatprep.subr.mxu0 0.0
      %1681 = vmatpush1.msra.mxu0 0.0
      %1682 = vmatprep.subr.mxu0 0.0
      %1683 = vmatpush1.msra.mxu0 0.0
      %1684 = vmatprep.subr.mxu0 0.0
      %1685 = vmatpush1.msra.mxu0 0.0
      %1686 = vmatprep.subr.mxu0 0.0
      %1687 = vmatpush1.msra.mxu0 0.0
      %1688 = vmatprep.subr.mxu0 0.0
      %1689 = vmatpush1.msra.mxu0 0.0
      %1690 = vmatprep.subr.mxu0 0.0
      %1691 = vmatpush1.msra.mxu0 0.0
      %1692 = vmatprep.subr.mxu0 0.0
      %1693 = vmatpush1.msra.mxu0 0.0
      %1694 = vmatprep.subr.mxu0 0.0
      %1695 = vmatpush1.msra.mxu0 0.0
      %1696 = vmatprep.subr.mxu0 0.0
      %1697 = vmatpush1.msra.mxu0 0.0
      %1698 = vmatprep.subr.mxu0 0.0
      %1699 = vmatpush1.msra.mxu0 0.0
      %1700 = vmatprep.subr.mxu0 0.0
      %1701 = vmatpush1.msra.mxu0 0.0
      %1702 = vmatprep.subr.mxu0 0.0
      %1703 = vmatpush1.msra.mxu0 0.0
      %1704 = vmatprep.subr.mxu0 %v1247
      %1705 = vmatpush1.msra.mxu0 %v1246
      %1706 = vmatprep.subr.mxu0 0.0
      %1707 = vmatpush2.msra.mxu0 0.0
      %1708 = vmatprep.subr.mxu0 0.0
      %1709 = vmatpush2.msra.mxu0 0.0
      %1710 = vmatprep.subr.mxu0 0.0
      %1711 = vmatpush2.msra.mxu0 0.0
      %1712 = vmatprep.subr.mxu0 0.0
      %1713 = vmatpush2.msra.mxu0 0.0
      %1714 = vmatprep.subr.mxu0 0.0
      %1715 = vmatpush2.msra.mxu0 0.0
      %1716 = vmatprep.subr.mxu0 0.0
      %1717 = vmatpush2.msra.mxu0 0.0
      %1718 = vmatprep.subr.mxu0 0.0
      %1719 = vmatpush2.msra.mxu0 0.0
      %1720 = vmatprep.subr.mxu0 0.0
      %1721 = vmatpush2.msra.mxu0 0.0
      %1722 = vmatprep.subr.mxu0 0.0
      %1723 = vmatpush2.msra.mxu0 0.0
      %1724 = vmatprep.subr.mxu0 0.0
      %1725 = vmatpush2.msra.mxu0 0.0
      %1726 = vmatprep.subr.mxu0 0.0
      %1727 = vmatpush2.msra.mxu0 0.0
      %1728 = vmatprep.subr.mxu0 0.0
      %1729 = vmatpush2.msra.mxu0 0.0
      %1730 = vmatprep.subr.mxu0 0.0
      %1731 = vmatpush2.msra.mxu0 0.0
      %1732 = vmatprep.subr.mxu0 0.0
      %1733 = vmatpush2.msra.mxu0 0.0
      %1734 = vmatprep.subr.mxu0 0.0
      %1735 = vmatpush2.msra.mxu0 0.0
      %1736 = vmatprep.subr.mxu0 0.0
      %1737 = vmatpush2.msra.mxu0 0.0
      %1738 = vmatprep.mubr.f32.mxu0 0.0
      %1739 = vmatmul.mubr.f32.gmra.mxu0 %v1672
      %v1740 = vpop.f32.mrf.mxu0
      %v1741 = vadd.f32 0.0, %v1740
      %v1742 = vpop.f32.mrf.mxu0
      %v1743 = vadd.f32 0.0, %v1742
      %1744 = vdwg.mxu0
      %v1745 = vadd.f32 %v1667, %v1741
      %v1746 = vadd.f32 %v1668, %v1743
      %1747 = vrot.lane.b32.xlu0 %v1246, 127
      %v1748 = vpop.permute.xlu0 %1747
      %1749 = vrot.lane.b32.xlu0 %v1247, 127
      %v1750 = vpop.permute.xlu0 %1749
      %v1751 = vsel %vm818, %v1748, %v1750
      %v1752 = vsel %vm818, %v1750, %v1748
      %v1753 = vmul.f32 %v1751, %v827
      %v1754 = vmul.f32 %v1752, %v831
      %s1755 = scalar_lea.vmem %s4, 40
      %v1756 = vld [vmem:[%s1755] sm:$0xff]
      %v1758 = vsel %vm1348, %v1756, 0
      %1760 = vmatprep.subr.mxu0 0.0
      %1761 = vmatpush1.msra.mxu0 0.0
      %1762 = vmatprep.subr.mxu0 0.0
      %1763 = vmatpush1.msra.mxu0 0.0
      %1764 = vmatprep.subr.mxu0 0.0
      %1765 = vmatpush1.msra.mxu0 0.0
      %1766 = vmatprep.subr.mxu0 0.0
      %1767 = vmatpush1.msra.mxu0 0.0
      %1768 = vmatprep.subr.mxu0 0.0
      %1769 = vmatpush1.msra.mxu0 0.0
      %1770 = vmatprep.subr.mxu0 0.0
      %1771 = vmatpush1.msra.mxu0 0.0
      %1772 = vmatprep.subr.mxu0 0.0
      %1773 = vmatpush1.msra.mxu0 0.0
      %1774 = vmatprep.subr.mxu0 0.0
      %1775 = vmatpush1.msra.mxu0 0.0
      %1776 = vmatprep.subr.mxu0 0.0
      %1777 = vmatpush1.msra.mxu0 0.0
      %1778 = vmatprep.subr.mxu0 0.0
      %1779 = vmatpush1.msra.mxu0 0.0
      %1780 = vmatprep.subr.mxu0 0.0
      %1781 = vmatpush1.msra.mxu0 0.0
      %1782 = vmatprep.subr.mxu0 0.0
      %1783 = vmatpush1.msra.mxu0 0.0
      %1784 = vmatprep.subr.mxu0 0.0
      %1785 = vmatpush1.msra.mxu0 0.0
      %1786 = vmatprep.subr.mxu0 0.0
      %1787 = vmatpush1.msra.mxu0 0.0
      %1788 = vmatprep.subr.mxu0 0.0
      %1789 = vmatpush1.msra.mxu0 0.0
      %1790 = vmatprep.subr.mxu0 %v1754
      %1791 = vmatpush1.msra.mxu0 %v1753
      %1792 = vmatprep.subr.mxu0 0.0
      %1793 = vmatpush2.msra.mxu0 0.0
      %1794 = vmatprep.subr.mxu0 0.0
      %1795 = vmatpush2.msra.mxu0 0.0
      %1796 = vmatprep.subr.mxu0 0.0
      %1797 = vmatpush2.msra.mxu0 0.0
      %1798 = vmatprep.subr.mxu0 0.0
      %1799 = vmatpush2.msra.mxu0 0.0
      %1800 = vmatprep.subr.mxu0 0.0
      %1801 = vmatpush2.msra.mxu0 0.0
      %1802 = vmatprep.subr.mxu0 0.0
      %1803 = vmatpush2.msra.mxu0 0.0
      %1804 = vmatprep.subr.mxu0 0.0
      %1805 = vmatpush2.msra.mxu0 0.0
      %1806 = vmatprep.subr.mxu0 0.0
      %1807 = vmatpush2.msra.mxu0 0.0
      %1808 = vmatprep.subr.mxu0 0.0
      %1809 = vmatpush2.msra.mxu0 0.0
      %1810 = vmatprep.subr.mxu0 0.0
      %1811 = vmatpush2.msra.mxu0 0.0
      %1812 = vmatprep.subr.mxu0 0.0
      %1813 = vmatpush2.msra.mxu0 0.0
      %1814 = vmatprep.subr.mxu0 0.0
      %1815 = vmatpush2.msra.mxu0 0.0
      %1816 = vmatprep.subr.mxu0 0.0
      %1817 = vmatpush2.msra.mxu0 0.0
      %1818 = vmatprep.subr.mxu0 0.0
      %1819 = vmatpush2.msra.mxu0 0.0
      %1820 = vmatprep.subr.mxu0 0.0
      %1821 = vmatpush2.msra.mxu0 0.0
      %1822 = vmatprep.subr.mxu0 0.0
      %1823 = vmatpush2.msra.mxu0 0.0
      %1824 = vmatprep.mubr.f32.mxu0 0.0
      %1825 = vmatmul.mubr.f32.gmra.mxu0 %v1758
      %v1826 = vpop.f32.mrf.mxu0
      %v1827 = vadd.f32 0.0, %v1826
      %v1828 = vpop.f32.mrf.mxu0
      %v1829 = vadd.f32 0.0, %v1828
      %1830 = vdwg.mxu0
      %v1831 = vadd.f32 %v1745, %v1827
      %v1832 = vadd.f32 %v1746, %v1829
      %1833 = vrot.lane.b32.xlu0 %v1246, 113
      %v1834 = vpop.permute.xlu0 %1833
      %1835 = vrot.lane.b32.xlu0 %v1247, 113
      %v1836 = vpop.permute.xlu0 %1835
      %v1837 = vsel %vm924, %v1834, %v1836
      %v1838 = vsel %vm924, %v1836, %v1834
      %v1839 = vmul.f32 %v1837, %v933
      %v1840 = vmul.f32 %v1838, %v937
      %s1841 = scalar_lea.vmem %s4, 48
      %v1842 = vld [vmem:[%s1841] sm:$0xff]
      %v1844 = vsel %vm1348, %v1842, 0
      %1846 = vmatprep.subr.mxu0 0.0
      %1847 = vmatpush1.msra.mxu0 0.0
      %1848 = vmatprep.subr.mxu0 0.0
      %1849 = vmatpush1.msra.mxu0 0.0
      %1850 = vmatprep.subr.mxu0 0.0
      %1851 = vmatpush1.msra.mxu0 0.0
      %1852 = vmatprep.subr.mxu0 0.0
      %1853 = vmatpush1.msra.mxu0 0.0
      %1854 = vmatprep.subr.mxu0 0.0
      %1855 = vmatpush1.msra.mxu0 0.0
      %1856 = vmatprep.subr.mxu0 0.0
      %1857 = vmatpush1.msra.mxu0 0.0
      %1858 = vmatprep.subr.mxu0 0.0
      %1859 = vmatpush1.msra.mxu0 0.0
      %1860 = vmatprep.subr.mxu0 0.0
      %1861 = vmatpush1.msra.mxu0 0.0
      %1862 = vmatprep.subr.mxu0 0.0
      %1863 = vmatpush1.msra.mxu0 0.0
      %1864 = vmatprep.subr.mxu0 0.0
      %1865 = vmatpush1.msra.mxu0 0.0
      %1866 = vmatprep.subr.mxu0 0.0
      %1867 = vmatpush1.msra.mxu0 0.0
      %1868 = vmatprep.subr.mxu0 0.0
      %1869 = vmatpush1.msra.mxu0 0.0
      %1870 = vmatprep.subr.mxu0 0.0
      %1871 = vmatpush1.msra.mxu0 0.0
      %1872 = vmatprep.subr.mxu0 0.0
      %1873 = vmatpush1.msra.mxu0 0.0
      %1874 = vmatprep.subr.mxu0 0.0
      %1875 = vmatpush1.msra.mxu0 0.0
      %1876 = vmatprep.subr.mxu0 %v1840
      %1877 = vmatpush1.msra.mxu0 %v1839
      %1878 = vmatprep.subr.mxu0 0.0
      %1879 = vmatpush2.msra.mxu0 0.0
      %1880 = vmatprep.subr.mxu0 0.0
      %1881 = vmatpush2.msra.mxu0 0.0
      %1882 = vmatprep.subr.mxu0 0.0
      %1883 = vmatpush2.msra.mxu0 0.0
      %1884 = vmatprep.subr.mxu0 0.0
      %1885 = vmatpush2.msra.mxu0 0.0
      %1886 = vmatprep.subr.mxu0 0.0
      %1887 = vmatpush2.msra.mxu0 0.0
      %1888 = vmatprep.subr.mxu0 0.0
      %1889 = vmatpush2.msra.mxu0 0.0
      %1890 = vmatprep.subr.mxu0 0.0
      %1891 = vmatpush2.msra.mxu0 0.0
      %1892 = vmatprep.subr.mxu0 0.0
      %1893 = vmatpush2.msra.mxu0 0.0
      %1894 = vmatprep.subr.mxu0 0.0
      %1895 = vmatpush2.msra.mxu0 0.0
      %1896 = vmatprep.subr.mxu0 0.0
      %1897 = vmatpush2.msra.mxu0 0.0
      %1898 = vmatprep.subr.mxu0 0.0
      %1899 = vmatpush2.msra.mxu0 0.0
      %1900 = vmatprep.subr.mxu0 0.0
      %1901 = vmatpush2.msra.mxu0 0.0
      %1902 = vmatprep.subr.mxu0 0.0
      %1903 = vmatpush2.msra.mxu0 0.0
      %1904 = vmatprep.subr.mxu0 0.0
      %1905 = vmatpush2.msra.mxu0 0.0
      %1906 = vmatprep.subr.mxu0 0.0
      %1907 = vmatpush2.msra.mxu0 0.0
      %1908 = vmatprep.subr.mxu0 0.0
      %1909 = vmatpush2.msra.mxu0 0.0
      %1910 = vmatprep.mubr.f32.mxu0 0.0
      %1911 = vmatmul.mubr.f32.gmra.mxu0 %v1844
      %v1912 = vpop.f32.mrf.mxu0
      %v1913 = vadd.f32 0.0, %v1912
      %v1914 = vpop.f32.mrf.mxu0
      %v1915 = vadd.f32 0.0, %v1914
      %1916 = vdwg.mxu0
      %v1917 = vadd.f32 %v1831, %v1913
      %v1918 = vadd.f32 %v1832, %v1915
      %1919 = vrot.lane.b32.xlu0 %v1246, 112
      %v1920 = vpop.permute.xlu0 %1919
      %1921 = vrot.lane.b32.xlu0 %v1247, 112
      %v1922 = vpop.permute.xlu0 %1921
      %v1923 = vsel %vm1030, %v1920, %v1922
      %v1924 = vsel %vm1030, %v1922, %v1920
      %v1925 = vmul.f32 %v1923, %v1039
      %v1926 = vmul.f32 %v1924, %v1043
      %s1927 = scalar_lea.vmem %s4, 56
      %v1928 = vld [vmem:[%s1927] sm:$0xff]
      %v1930 = vsel %vm1348, %v1928, 0
      %1932 = vmatprep.subr.mxu0 0.0
      %1933 = vmatpush1.msra.mxu0 0.0
      %1934 = vmatprep.subr.mxu0 0.0
      %1935 = vmatpush1.msra.mxu0 0.0
      %1936 = vmatprep.subr.mxu0 0.0
      %1937 = vmatpush1.msra.mxu0 0.0
      %1938 = vmatprep.subr.mxu0 0.0
      %1939 = vmatpush1.msra.mxu0 0.0
      %1940 = vmatprep.subr.mxu0 0.0
      %1941 = vmatpush1.msra.mxu0 0.0
      %1942 = vmatprep.subr.mxu0 0.0
      %1943 = vmatpush1.msra.mxu0 0.0
      %1944 = vmatprep.subr.mxu0 0.0
      %1945 = vmatpush1.msra.mxu0 0.0
      %1946 = vmatprep.subr.mxu0 0.0
      %1947 = vmatpush1.msra.mxu0 0.0
      %1948 = vmatprep.subr.mxu0 0.0
      %1949 = vmatpush1.msra.mxu0 0.0
      %1950 = vmatprep.subr.mxu0 0.0
      %1951 = vmatpush1.msra.mxu0 0.0
      %1952 = vmatprep.subr.mxu0 0.0
      %1953 = vmatpush1.msra.mxu0 0.0
      %1954 = vmatprep.subr.mxu0 0.0
      %1955 = vmatpush1.msra.mxu0 0.0
      %1956 = vmatprep.subr.mxu0 0.0
      %1957 = vmatpush1.msra.mxu0 0.0
      %1958 = vmatprep.subr.mxu0 0.0
      %1959 = vmatpush1.msra.mxu0 0.0
      %1960 = vmatprep.subr.mxu0 0.0
      %1961 = vmatpush1.msra.mxu0 0.0
      %1962 = vmatprep.subr.mxu0 %v1926
      %1963 = vmatpush1.msra.mxu0 %v1925
      %1964 = vmatprep.subr.mxu0 0.0
      %1965 = vmatpush2.msra.mxu0 0.0
      %1966 = vmatprep.subr.mxu0 0.0
      %1967 = vmatpush2.msra.mxu0 0.0
      %1968 = vmatprep.subr.mxu0 0.0
      %1969 = vmatpush2.msra.mxu0 0.0
      %1970 = vmatprep.subr.mxu0 0.0
      %1971 = vmatpush2.msra.mxu0 0.0
      %1972 = vmatprep.subr.mxu0 0.0
      %1973 = vmatpush2.msra.mxu0 0.0
      %1974 = vmatprep.subr.mxu0 0.0
      %1975 = vmatpush2.msra.mxu0 0.0
      %1976 = vmatprep.subr.mxu0 0.0
      %1977 = vmatpush2.msra.mxu0 0.0
      %1978 = vmatprep.subr.mxu0 0.0
      %1979 = vmatpush2.msra.mxu0 0.0
      %1980 = vmatprep.subr.mxu0 0.0
      %1981 = vmatpush2.msra.mxu0 0.0
      %1982 = vmatprep.subr.mxu0 0.0
      %1983 = vmatpush2.msra.mxu0 0.0
      %1984 = vmatprep.subr.mxu0 0.0
      %1985 = vmatpush2.msra.mxu0 0.0
      %1986 = vmatprep.subr.mxu0 0.0
      %1987 = vmatpush2.msra.mxu0 0.0
      %1988 = vmatprep.subr.mxu0 0.0
      %1989 = vmatpush2.msra.mxu0 0.0
      %1990 = vmatprep.subr.mxu0 0.0
      %1991 = vmatpush2.msra.mxu0 0.0
      %1992 = vmatprep.subr.mxu0 0.0
      %1993 = vmatpush2.msra.mxu0 0.0
      %1994 = vmatprep.subr.mxu0 0.0
      %1995 = vmatpush2.msra.mxu0 0.0
      %1996 = vmatprep.mubr.f32.mxu0 0.0
      %1997 = vmatmul.mubr.f32.gmra.mxu0 %v1930
      %v1998 = vpop.f32.mrf.mxu0
      %v1999 = vadd.f32 0.0, %v1998
      %v2000 = vpop.f32.mrf.mxu0
      %v2001 = vadd.f32 0.0, %v2000
      %2002 = vdwg.mxu0
      %v2003 = vadd.f32 %v1917, %v1999
      %v2004 = vadd.f32 %v1918, %v2001
      %2005 = vrot.lane.b32.xlu0 %v1246, 111
      %v2006 = vpop.permute.xlu0 %2005
      %2007 = vrot.lane.b32.xlu0 %v1247, 111
      %v2008 = vpop.permute.xlu0 %2007
      %v2009 = vsel %vm1136, %v2006, %v2008
      %v2010 = vsel %vm1136, %v2008, %v2006
      %v2011 = vmul.f32 %v2009, %v1145
      %v2012 = vmul.f32 %v2010, %v1149
      %s2013 = scalar_lea.vmem %s4, 64
      %v2014 = vld [vmem:[%s2013] sm:$0xff]
      %v2016 = vsel %vm1348, %v2014, 0
      %2018 = vmatprep.subr.mxu0 0.0
      %2019 = vmatpush1.msra.mxu0 0.0
      %2020 = vmatprep.subr.mxu0 0.0
      %2021 = vmatpush1.msra.mxu0 0.0
      %2022 = vmatprep.subr.mxu0 0.0
      %2023 = vmatpush1.msra.mxu0 0.0
      %2024 = vmatprep.subr.mxu0 0.0
      %2025 = vmatpush1.msra.mxu0 0.0
      %2026 = vmatprep.subr.mxu0 0.0
      %2027 = vmatpush1.msra.mxu0 0.0
      %2028 = vmatprep.subr.mxu0 0.0
      %2029 = vmatpush1.msra.mxu0 0.0
      %2030 = vmatprep.subr.mxu0 0.0
      %2031 = vmatpush1.msra.mxu0 0.0
      %2032 = vmatprep.subr.mxu0 0.0
      %2033 = vmatpush1.msra.mxu0 0.0
      %2034 = vmatprep.subr.mxu0 0.0
      %2035 = vmatpush1.msra.mxu0 0.0
      %2036 = vmatprep.subr.mxu0 0.0
      %2037 = vmatpush1.msra.mxu0 0.0
      %2038 = vmatprep.subr.mxu0 0.0
      %2039 = vmatpush1.msra.mxu0 0.0
      %2040 = vmatprep.subr.mxu0 0.0
      %2041 = vmatpush1.msra.mxu0 0.0
      %2042 = vmatprep.subr.mxu0 0.0
      %2043 = vmatpush1.msra.mxu0 0.0
      %2044 = vmatprep.subr.mxu0 0.0
      %2045 = vmatpush1.msra.mxu0 0.0
      %2046 = vmatprep.subr.mxu0 0.0
      %2047 = vmatpush1.msra.mxu0 0.0
      %2048 = vmatprep.subr.mxu0 %v2012
      %2049 = vmatpush1.msra.mxu0 %v2011
      %2050 = vmatprep.subr.mxu0 0.0
      %2051 = vmatpush2.msra.mxu0 0.0
      %2052 = vmatprep.subr.mxu0 0.0
      %2053 = vmatpush2.msra.mxu0 0.0
      %2054 = vmatprep.subr.mxu0 0.0
      %2055 = vmatpush2.msra.mxu0 0.0
      %2056 = vmatprep.subr.mxu0 0.0
      %2057 = vmatpush2.msra.mxu0 0.0
      %2058 = vmatprep.subr.mxu0 0.0
      %2059 = vmatpush2.msra.mxu0 0.0
      %2060 = vmatprep.subr.mxu0 0.0
      %2061 = vmatpush2.msra.mxu0 0.0
      %2062 = vmatprep.subr.mxu0 0.0
      %2063 = vmatpush2.msra.mxu0 0.0
      %2064 = vmatprep.subr.mxu0 0.0
      %2065 = vmatpush2.msra.mxu0 0.0
      %2066 = vmatprep.subr.mxu0 0.0
      %2067 = vmatpush2.msra.mxu0 0.0
      %2068 = vmatprep.subr.mxu0 0.0
      %2069 = vmatpush2.msra.mxu0 0.0
      %2070 = vmatprep.subr.mxu0 0.0
      %2071 = vmatpush2.msra.mxu0 0.0
      %2072 = vmatprep.subr.mxu0 0.0
      %2073 = vmatpush2.msra.mxu0 0.0
      %2074 = vmatprep.subr.mxu0 0.0
      %2075 = vmatpush2.msra.mxu0 0.0
      %2076 = vmatprep.subr.mxu0 0.0
      %2077 = vmatpush2.msra.mxu0 0.0
      %2078 = vmatprep.subr.mxu0 0.0
      %2079 = vmatpush2.msra.mxu0 0.0
      %2080 = vmatprep.subr.mxu0 0.0
      %2081 = vmatpush2.msra.mxu0 0.0
      %2082 = vmatprep.mubr.f32.mxu0 0.0
      %2083 = vmatmul.mubr.f32.gmra.mxu0 %v2016
      %v2084 = vpop.f32.mrf.mxu0
      %v2085 = vadd.f32 0.0, %v2084
      %v2086 = vpop.f32.mrf.mxu0
      %v2087 = vadd.f32 0.0, %v2086
      %2088 = vdwg.mxu0
      %v2089 = vadd.f32 %v2003, %v2085
      %v2090 = vadd.f32 %v2004, %v2087
      %v2091 = vld [vmem:[%s5] sm:$0xff]
      %2093 = vset.pattern.permute.xlu0 0
      %2094 = vperm.xlu0 %2093, %v2091
      %v2095 = vpop.permute.xlu0 %2094
      %v2097 = vadd.f32 %v2089, %v2095
      %v2098 = vadd.f32 %v2090, %v2095
      %v2099 = vadd.f32 %v2097, %v1325
      %v2100 = vadd.f32 %v2098, %v1327
      %v2101 = vmax.f32 %v2099, 0.0
      %v2102 = vmax.f32 %v2100, 0.0
      %2103 = vst [vmem:[%s305] sm:$0xff] %v2101
      %2104 = vst [vmem:[%s305 + $0x8] sm:$0xff] %v2102
      %p2105 = scmp.lt.s32.totalorder %s19, 1
      %s2106 = scalar_select %p2105, %s19, 1
      %s2107 = smul.addr %s2106, 2
      %s2108 = smul.addr %s2107, 8
      %s2109 = scalar_lea.vmem %s8, %s2108
      // Predicated region
      $region53: #{resblock_forward.1} parent=51 // pred_check
        %p2110 = pneg %p210
      $region54: #{resblock_forward.1} parent=51 // pred_check_branch
        %2112 = sbr.rel (%p2110) target = $region56
      $region55: #{resblock_forward.1} parent=51 // pred_region
        _
      $region56: #{resblock_forward.1} parent=51 // pred_fallthru
        _
    $region52: #{resblock_forward.1} parent=5 // pred_fallthru
      _
    %p2113 = scmp.le.s32.totalorder 2, %s14
    // Predicated region
    $region57: #{resblock_forward.1} parent=5 // pred_check
      %p2114 = pneg %p2113
    $region58: #{resblock_forward.1} parent=5 // pred_check_branch
      %2116 = sbr.rel (%p2114) target = $region60
    $region59: #{resblock_forward.1} parent=5 // pred_region
      %s2117 = ssub.s32 %s14, 2
      // Predicated region
      $region61: #{resblock_forward.1} parent=59 // pred_check
        %p2118 = pneg %p216
      $region62: #{resblock_forward.1} parent=59 // pred_check_branch
        %2120 = sbr.rel (%p2118) target = $region64
      $region63: #{resblock_forward.1} parent=59 // pred_region
        %p2121 = scmp.lt.s32.totalorder %s20, 1
        %s2122 = scalar_select %p2121, %s20, 1
        %s2123 = smul.addr %s2122, 2
        %s2124 = smul.addr %s2123, 8
        %s2125 = scalar_lea.vmem %s8, %s2124
      $region64: #{resblock_forward.1} parent=59 // pred_fallthru
        _
    $region60: #{resblock_forward.1} parent=5 // pred_fallthru
      _
  $region6: #{resblock_forward.1} parent=0 // loop_footer
    %s18 = sadd.s32 1, %s14
  $region7: #{resblock_forward.1} parent=0 // loop_footer_branch
    %13 = sbr.rel target = $region3
  $region8: #{resblock_forward.1} parent=0 // loop_exit
    _

</llo_original>
